<compile_context>
chip_gen: v7x
topology: tpu7x:2x2x1
jax: 0.10.0
libtpu: 0.0.40
codegen_flags: <defaults>
</compile_context>

<pallas_src>
import jax
import jax.numpy as jnp
import numpy as np
from jax.experimental import pallas as pl
from jax.experimental.pallas import tpu as pltpu

KSIZE = 7
PAD = KSIZE // 2


# ---------------------------------------------------------------------------
# Kernel
# ---------------------------------------------------------------------------
def cbam_kernel(x_ref, w1t_ref, w2t_ref, wc_ref, o_ref):
    # x_ref:   (Nb, C, HW)      input block (HW lane-dense), input dtype
    # w1t_ref: (C, Ch)  f32     transpose of Conv2d(C, C//r, 1) weight
    # w2t_ref: (Ch, C)  f32     transpose of Conv2d(C//r, C, 1) weight
    # wc_ref:  (2*HW, HW) bf16  stacked Toeplitz form of the 7x7 SAME conv
    # o_ref:   (Nb, C, HW)      output block
    x = x_ref[...]                                            # keep input dtype
    nb = x.shape[0]

    # ---------------- Channel attention ----------------
    # Only the (2*Nb, C) pooled descriptors are promoted to f32; the bulky
    # (Nb, C, HW) tensors stay in the input dtype.
    pooled = jnp.concatenate(
        [jnp.mean(x, axis=2, dtype=jnp.float32),
         jnp.max(x, axis=2).astype(jnp.float32)], axis=0)     # (2*Nb, C)
    # NOTE: with Ch < 8 these two dots are latency filler rather than MXU
    # throughput; kept as matmuls since the kernel is HBM-bound at these sizes.
    hidden = jnp.maximum(
        jnp.dot(pooled, w1t_ref[...], preferred_element_type=jnp.float32), 0.0)
    fcout = jnp.dot(hidden, w2t_ref[...], preferred_element_type=jnp.float32)
    ca = jax.nn.sigmoid(fcout[:nb] + fcout[nb:])              # (Nb, C) f32
    y = x * ca.astype(x.dtype)[:, :, None]                    # (Nb, C, HW)

    # ---------------- Spatial attention ----------------
    avg_s = jnp.mean(y, axis=1, dtype=jnp.float32)            # (Nb, HW)
    max_s = jnp.max(y, axis=1).astype(jnp.float32)            # (Nb, HW)
    # One fused bf16 MXU matmul (K = 2*HW) replaces two f32 dots + an add.
    s_stack = jnp.concatenate([avg_s, max_s], axis=1).astype(jnp.bfloat16)
    conv = jnp.dot(s_stack, wc_ref[...],
                   preferred_element_type=jnp.float32)        # (Nb, HW)
    sa = jax.nn.sigmoid(conv)

    o_ref[...] = (y * sa.astype(y.dtype)[:, None, :]).astype(o_ref.dtype)


# ---------------------------------------------------------------------------
# Host-side helpers
# ---------------------------------------------------------------------------
def _conv7x7_toeplitz(wsp, H, W):
    """Fold the 7x7 SAME conv (2 in-ch -> 1 out-ch, OIHW weight (1,2,7,7)) into
    a single stacked (2*HW, HW) matrix so that
        conv_flat = concat([avg_flat, max_flat], axis=-1) @ T_stacked
    Zero padding is implicit (out-of-range taps are simply absent).  Stored as
    bf16 (MXU-native feed); accumulation stays f32 in-kernel.
    Memory is O((H*W)^2) -- fine for CBAM-sized maps (HW=256 -> 256 KiB bf16).
    """
    # TODO(synk): for large H*W, tile wc over its output-HW axis with a second
    # grid dimension (or a banded form) so it fits v7x's 64 MiB VMEM.
    w = np.asarray(wsp, np.float32)[0]                        # (2, 7, 7)
    HW = H * W
    T = np.zeros((2, HW, HW), np.float32)
    io, jo = np.meshgrid(np.arange(H), np.arange(W), indexing="ij")
    out_idx_full = io * W + jo
    for dy in range(KSIZE):
        for dx in range(KSIZE):
            ii = io + dy - PAD
            jj = jo + dx - PAD
            valid = (ii >= 0) & (ii < H) & (jj >= 0) & (jj < W)
            in_idx = (ii * W + jj)[valid]
            out_idx = out_idx_full[valid]
            T[:, in_idx, out_idx] = w[:, dy, dx][:, None]
    return jnp.asarray(T.reshape(2 * HW, HW), dtype=jnp.bfloat16)


def _num_tensorcores():
    """Best-effort TensorCores-per-chip (v7x has 2; v5e/v6e have 1)."""
    try:
        kind = jax.devices()[0].device_kind.lower()
        if "v7" in kind:
            return 2
    except Exception:
        pass
    return 1


def _pick_block_batch(n, c, hw, itemsize, num_tensorcores,
                      block_budget_bytes=12 << 20):
    """Samples per grid step.

    Sized against a ~12 MiB block-traffic budget (in + out, double-buffered):
    the kernel is HBM/step-overhead bound so the biggest per-step block wins.
    nb is kept a multiple of 8 (sublane-aligned MXU M dim) when N permits.  On
    single-TC chips (v5e/v6e) nb grows to the full budget; on dual-TC chips
    (v7x) we keep >= 2 grid steps and an even step count so the 'parallel'
    batch axis splits evenly across the two TensorCores.
    Returns (nb, steps) with nb * steps >= n (caller zero-pads the batch).
    """
    per_sample = 2 * 2 * c * hw * itemsize          # in + out block, 2x buffered
    nb = max(1, block_budget_bytes // per_sample)
    nb = min(nb, n)
    if nb >= 8:
        nb -= nb % 8
    if num_tensorcores >= 2 and n > 1:
        nb = min(nb, pl.cdiv(n, 2))
        if nb >= 8:
            nb -= nb % 8
    nb = max(nb, 1)
    steps = pl.cdiv(n, nb)
    if num_tensorcores >= 2 and steps > 1 and steps % 2:
        # Rebalance to an even step count (odd counts idle one TC for a step).
        nb = max(pl.cdiv(n, steps + 1), 1)
        steps = pl.cdiv(n, nb)
    return nb, steps


def cbam_pallas(x, w1, w2, wsp, *, num_tensorcores=None):
    """x: (N, C, H, W); w1: (C//r, C); w2: (C, C//r); wsp: (1, 2, 7, 7)."""
    N, C, H, W = x.shape
    HW = H * W
    Ch = w1.shape[0]
    if num_tensorcores is None:
        num_tensorcores = _num_tensorcores()

    # Lane-dense relabel of contiguous NCHW memory: (N, C, H*W).
    x3 = x.reshape(N, C, HW)
    w1t = jnp.transpose(w1).astype(jnp.float32)               # (C, Ch)
    w2t = jnp.transpose(w2).astype(jnp.float32)               # (Ch, C)
    wc = _conv7x7_toeplitz(wsp, H, W)                         # (2*HW, HW) bf16

    nb, steps = _pick_block_batch(N, C, HW, x.dtype.itemsize, num_tensorcores)
    n_pad = nb * steps
    if n_pad != N:
        # Pad the batch instead of degrading nb to a divisor of N; padded
        # samples are computed on zeros (finite) and sliced off below.
        x3 = jnp.pad(x3, ((0, n_pad - N), (0, 0), (0, 0)))

    # Explicit VMEM budget: double-buffered in/out blocks + resident weights
    # (counted at 2 buffers, conservative) + f32 temporaries, with headroom.
    block_bytes = 2 * 2 * nb * C * HW * x.dtype.itemsize
    weight_bytes = 2 * (wc.size * wc.dtype.itemsize + (w1t.size + w2t.size) * 4)
    interm_bytes = 4 * nb * C * HW * 4
    vmem_limit = int(min(max(block_bytes + weight_bytes + interm_bytes
                             + (4 << 20), 32 << 20), 48 << 20))

    def call(single_buffer_weights):
        def wspec(shape, index_map):
            if single_buffer_weights and hasattr(pl, "Buffered"):
                # Constant-index weights: drop the dead second pipeline buffer.
                return pl.BlockSpec(shape, index_map,
                                    pipeline_mode=pl.Buffered(1))
            return pl.BlockSpec(shape, index_map)

        grid_spec = pltpu.PrefetchScalarGridSpec(
            num_scalar_prefetch=0,
            grid=(steps,),
            in_specs=[
                pl.BlockSpec((nb, C, HW), lambda n: (n, 0, 0)),
                wspec((C, Ch), lambda n: (0, 0)),
                wspec((Ch, C), lambda n: (0, 0)),
                wspec((2 * HW, HW), lambda n: (0, 0)),
            ],
            out_specs=pl.BlockSpec((nb, C, HW), lambda n: (n, 0, 0)),
        )
        return pl.pallas_call(
            cbam_kernel,
            out_shape=jax.ShapeDtypeStruct((n_pad, C, HW), x.dtype),
            grid_spec=grid_spec,
            compiler_params=pltpu.CompilerParams(
                # Samples are independent -> shard the batch axis across TCs.
                dimension_semantics=("parallel",),
                vmem_limit_bytes=vmem_limit,
            ),
        )(x3, w1t, w2t, wc)

    try:
        out3 = call(True)
    except Exception:
        # Fallback for JAX versions without BlockSpec pipeline_mode support.
        out3 = call(False)
    return out3[:N].reshape(N, C, H, W)


# ---------------------------------------------------------------------------
# Pure-JAX reference (matches the PyTorch forward pass exactly)
# ---------------------------------------------------------------------------
def cbam_reference(x, w1, w2, wsp):
    # Channel attention
    avg = jnp.mean(x, axis=(2, 3), keepdims=True)
    mx = jnp.max(x, axis=(2, 3), keepdims=True)

    def fc(v):  # v: (N, C, 1, 1)
        h = jnp.einsum('nchw,oc->nohw', v, w1)
        h = jnp.maximum(h, 0.0)
        return jnp.einsum('nohw,co->nchw', h, w2)

    ca = jax.nn.sigmoid(fc(avg) + fc(mx))
    y = ca * x
    # Spatial attention
    avg_s = jnp.mean(y, axis=1, keepdims=True)
    max_s = jnp.max(y, axis=1, keepdims=True)
    s = jnp.concatenate([avg_s, max_s], axis=1)               # (N, 2, H, W)
    conv = jax.lax.conv_general_dilated(
        s, wsp, window_strides=(1, 1), padding='SAME',
        dimension_numbers=('NCHW', 'OIHW', 'NCHW'))
    sa = jax.nn.sigmoid(conv)
    return sa * y


if __name__ == "__main__":
    N, C, H, W = 2, 32, 16, 16      # channels=32, ratio=16 -> hidden=2
    RATIO = 16
    CH = max(C // RATIO, 1)

    key = jax.random.PRNGKey(0)
    kx, k1, k2, k3 = jax.random.split(key, 4)
    x = jax.random.normal(kx, (N, C, H, W), dtype=jnp.float32)
    w1 = 0.1 * jax.random.normal(k1, (CH, C), dtype=jnp.float32)          # Conv2d(C, C//16, 1)
    w2 = 0.1 * jax.random.normal(k2, (C, CH), dtype=jnp.float32)          # Conv2d(C//16, C, 1)
    wsp = 0.1 * jax.random.normal(k3, (1, 2, KSIZE, KSIZE), dtype=jnp.float32)  # Conv2d(2, 1, 7)

    out = jax.block_until_ready(cbam_pallas(x, w1, w2, wsp))
    ref = jax.block_until_ready(cbam_reference(x, w1, w2, wsp))

    # The spatial-attention matmul feeds the MXU in bf16 (f32 accumulation),
    # so allow ~1e-2 slack vs the pure-f32 reference conv.
    if not jnp.allclose(out, ref, atol=1e-2, rtol=1e-2):
        raise AssertionError(
            f"mismatch: max abs err {jnp.max(jnp.abs(out - ref))}")
    print("KERNEL_OK")
</pallas_src>

<mosaic_0001>
module attributes {stable_mosaic.version = 11 : i64} {
  func.func @cbam_kernel(%arg0: i32, %arg1: memref<2x32x256xf32, #tpu.memory_space<vmem>>, %arg2: memref<32x2xf32, #tpu.memory_space<vmem>>, %arg3: memref<2x32xf32, #tpu.memory_space<vmem>>, %arg4: memref<512x256xbf16, #tpu.memory_space<vmem>>, %arg5: memref<2x32x256xf32, #tpu.memory_space<vmem>>) attributes {dimension_semantics = [#tpu.dimension_semantics<parallel>], iteration_bounds = array<i64: 1>, scalar_prefetch = 0 : i64, scratch_operands = 0 : i64, tpu.core_type = #tpu.core_type<tc>, window_params = [{transform_indices = @transform_0, window_bounds = array<i64: 2, 32, 256>}, {pipeline_mode = #tpu.pipeline_mode<synchronous>, transform_indices = @transform_1, window_bounds = array<i64: 32, 2>}, {pipeline_mode = #tpu.pipeline_mode<synchronous>, transform_indices = @transform_2, window_bounds = array<i64: 2, 32>}, {pipeline_mode = #tpu.pipeline_mode<synchronous>, transform_indices = @transform_3, window_bounds = array<i64: 512, 256>}, {transform_indices = @transform_4, window_bounds = array<i64: 2, 32, 256>}]} {
    %c0 = arith.constant 0 : index
    %c0_0 = arith.constant 0 : index
    %c0_1 = arith.constant 0 : index
    %0 = vector.load %arg1[%c0, %c0_0, %c0_1] : memref<2x32x256xf32, #tpu.memory_space<vmem>>, vector<2x32x256xf32>
    %cst = arith.constant dense<0.000000e+00> : vector<2x32xf32>
    %1 = vector.multi_reduction <add>, %0, %cst [2] : vector<2x32x256xf32> to vector<2x32xf32>
    %cst_2 = arith.constant 2.560000e+02 : f32
    %2 = vector.broadcast %cst_2 : f32 to vector<2x32xf32>
    %3 = arith.divf %1, %2 : vector<2x32xf32>
    %cst_3 = arith.constant dense<0xFF800000> : vector<2x32xf32>
    %4 = vector.multi_reduction <maximumf>, %0, %cst_3 [2] : vector<2x32x256xf32> to vector<2x32xf32>
    %5 = tpu.concatenate %3, %4 in 0 : vector<2x32xf32>, vector<2x32xf32> -> vector<4x32xf32>
    %c0_4 = arith.constant 0 : index
    %c0_5 = arith.constant 0 : index
    %6 = vector.load %arg2[%c0_4, %c0_5] : memref<32x2xf32, #tpu.memory_space<vmem>>, vector<32x2xf32>
    %cst_6 = arith.constant dense<0.000000e+00> : vector<4x2xf32>
    %7 = tpu.matmul %5, %6, %cst_6 {dimension_numbers = #tpu.dot_dimension_numbers<[1], [0], [0], [1], [0, 0, 1, 1], [], []>} : vector<4x32xf32>, vector<32x2xf32>, vector<4x2xf32> -> vector<4x2xf32>
    %cst_7 = arith.constant 0.000000e+00 : f32
    %8 = vector.broadcast %cst_7 : f32 to vector<4x2xf32>
    %9 = arith.maximumf %7, %8 : vector<4x2xf32>
    %c0_8 = arith.constant 0 : index
    %c0_9 = arith.constant 0 : index
    %10 = vector.load %arg3[%c0_8, %c0_9] : memref<2x32xf32, #tpu.memory_space<vmem>>, vector<2x32xf32>
    %cst_10 = arith.constant dense<0.000000e+00> : vector<4x32xf32>
    %11 = tpu.matmul %9, %10, %cst_10 {dimension_numbers = #tpu.dot_dimension_numbers<[1], [0], [0], [1], [0, 0, 1, 1], [], []>} : vector<4x2xf32>, vector<2x32xf32>, vector<4x32xf32> -> vector<4x32xf32>
    %12 = vector.extract_strided_slice %11 {offsets = [0, 0], sizes = [2, 32], strides = [1, 1]} : vector<4x32xf32> to vector<2x32xf32>
    %13 = vector.extract_strided_slice %11 {offsets = [2, 0], sizes = [2, 32], strides = [1, 1]} : vector<4x32xf32> to vector<2x32xf32>
    %14 = arith.addf %12, %13 : vector<2x32xf32>
    %15 = arith.negf %14 : vector<2x32xf32>
    %16 = math.exp %15 : vector<2x32xf32>
    %cst_11 = arith.constant 1.000000e+00 : f32
    %17 = vector.broadcast %cst_11 : f32 to vector<2x32xf32>
    %18 = arith.addf %17, %16 : vector<2x32xf32>
    %19 = arith.divf %17, %18 : vector<2x32xf32>
    %20 = vector.shape_cast %19 : vector<2x32xf32> to vector<2x32x1xf32>
    %21 = vector.broadcast %20 : vector<2x32x1xf32> to vector<2x32x256xf32>
    %22 = arith.mulf %0, %21 : vector<2x32x256xf32>
    %cst_12 = arith.constant dense<0.000000e+00> : vector<2x256xf32>
    %23 = vector.multi_reduction <add>, %22, %cst_12 [1] : vector<2x32x256xf32> to vector<2x256xf32>
    %cst_13 = arith.constant 3.200000e+01 : f32
    %24 = vector.broadcast %cst_13 : f32 to vector<2x256xf32>
    %25 = arith.divf %23, %24 : vector<2x256xf32>
    %cst_14 = arith.constant dense<0xFF800000> : vector<2x256xf32>
    %26 = vector.multi_reduction <maximumf>, %22, %cst_14 [1] : vector<2x32x256xf32> to vector<2x256xf32>
    %27 = tpu.concatenate %25, %26 in 1 : vector<2x256xf32>, vector<2x256xf32> -> vector<2x512xf32>
    %28 = arith.truncf %27 : vector<2x512xf32> to vector<2x512xbf16>
    %c0_15 = arith.constant 0 : index
    %c0_16 = arith.constant 0 : index
    %29 = vector.load %arg4[%c0_15, %c0_16] : memref<512x256xbf16, #tpu.memory_space<vmem>>, vector<512x256xbf16>
    %cst_17 = arith.constant dense<0.000000e+00> : vector<2x256xf32>
    %30 = tpu.matmul %28, %29, %cst_17 {dimension_numbers = #tpu.dot_dimension_numbers<[1], [0], [0], [1], [0, 0, 1, 1], [], []>} : vector<2x512xbf16>, vector<512x256xbf16>, vector<2x256xf32> -> vector<2x256xf32>
    %31 = arith.negf %30 : vector<2x256xf32>
    %32 = math.exp %31 : vector<2x256xf32>
    %cst_18 = arith.constant 1.000000e+00 : f32
    %33 = vector.broadcast %cst_18 : f32 to vector<2x256xf32>
    %34 = arith.addf %33, %32 : vector<2x256xf32>
    %35 = arith.divf %33, %34 : vector<2x256xf32>
    %36 = vector.shape_cast %35 : vector<2x256xf32> to vector<2x1x256xf32>
    %37 = vector.broadcast %36 : vector<2x1x256xf32> to vector<2x32x256xf32>
    %38 = arith.mulf %22, %37 : vector<2x32x256xf32>
    %c0_19 = arith.constant 0 : index
    %c0_20 = arith.constant 0 : index
    %c0_21 = arith.constant 0 : index
    %39 = vector.load %arg5[%c0_19, %c0_20, %c0_21] : memref<2x32x256xf32, #tpu.memory_space<vmem>>, vector<2x32x256xf32>
    tpu.vector_store %arg5[%c0_19, %c0_20, %c0_21], %38 {strides = array<i32>} : memref<2x32x256xf32, #tpu.memory_space<vmem>>, vector<2x32x256xf32>,
    return
  }
  func.func @transform_0(%arg0: i32) -> (i32, i32, i32) {
    %c0_i32 = arith.constant 0 : i32
    %c0_i32_0 = arith.constant 0 : i32
    %c0_i32_1 = arith.constant 0 : i32
    return %arg0, %c0_i32, %c0_i32_0 : i32, i32, i32
  }
  func.func @transform_1(%arg0: i32) -> (i32, i32) {
    %c0_i32 = arith.constant 0 : i32
    %c0_i32_0 = arith.constant 0 : i32
    %c0_i32_1 = arith.constant 0 : i32
    return %c0_i32, %c0_i32_0 : i32, i32
  }
  func.func @transform_2(%arg0: i32) -> (i32, i32) {
    %c0_i32 = arith.constant 0 : i32
    %c0_i32_0 = arith.constant 0 : i32
    %c0_i32_1 = arith.constant 0 : i32
    return %c0_i32, %c0_i32_0 : i32, i32
  }
  func.func @transform_3(%arg0: i32) -> (i32, i32) {
    %c0_i32 = arith.constant 0 : i32
    %c0_i32_0 = arith.constant 0 : i32
    %c0_i32_1 = arith.constant 0 : i32
    return %c0_i32, %c0_i32_0 : i32, i32
  }
  func.func @transform_4(%arg0: i32) -> (i32, i32, i32) {
    %c0_i32 = arith.constant 0 : i32
    %c0_i32_0 = arith.constant 0 : i32
    %c0_i32_1 = arith.constant 0 : i32
    return %arg0, %c0_i32, %c0_i32_0 : i32, i32, i32
  }
}

module attributes {stable_mosaic.version = 11 : i64} {
  func.func @cbam_kernel(%arg0: i32, %arg1: memref<2x32x256xf32, #tpu.memory_space<vmem>>, %arg2: memref<32x2xf32, #tpu.memory_space<vmem>>, %arg3: memref<2x32xf32, #tpu.memory_space<vmem>>, %arg4: memref<512x256xbf16, #tpu.memory_space<vmem>>, %arg5: memref<2x32x256xf32, #tpu.memory_space<vmem>>) attributes {dimension_semantics = [#tpu.dimension_semantics<parallel>], iteration_bounds = array<i64: 1>, scalar_prefetch = 0 : i64, scratch_operands = 0 : i64, tpu.core_type = #tpu.core_type<tc>, window_params = [{transform_indices = @transform_0, window_bounds = array<i64: 2, 32, 256>}, {pipeline_mode = #tpu.pipeline_mode<synchronous>, transform_indices = @transform_1, window_bounds = array<i64: 32, 2>}, {pipeline_mode = #tpu.pipeline_mode<synchronous>, transform_indices = @transform_2, window_bounds = array<i64: 2, 32>}, {pipeline_mode = #tpu.pipeline_mode<synchronous>, transform_indices = @transform_3, window_bounds = array<i64: 512, 256>}, {transform_indices = @transform_4, window_bounds = array<i64: 2, 32, 256>}]} {
    %c0 = arith.constant 0 : index
    %c0_0 = arith.constant 0 : index
    %c0_1 = arith.constant 0 : index
    %0 = vector.load %arg1[%c0, %c0_0, %c0_1] : memref<2x32x256xf32, #tpu.memory_space<vmem>>, vector<2x32x256xf32>
    %cst = arith.constant dense<0.000000e+00> : vector<2x32xf32>
    %1 = vector.multi_reduction <add>, %0, %cst [2] : vector<2x32x256xf32> to vector<2x32xf32>
    %cst_2 = arith.constant 2.560000e+02 : f32
    %2 = vector.broadcast %cst_2 : f32 to vector<2x32xf32>
    %3 = arith.divf %1, %2 : vector<2x32xf32>
    %cst_3 = arith.constant dense<0xFF800000> : vector<2x32xf32>
    %4 = vector.multi_reduction <maximumf>, %0, %cst_3 [2] : vector<2x32x256xf32> to vector<2x32xf32>
    %5 = tpu.concatenate %3, %4 in 0 : vector<2x32xf32>, vector<2x32xf32> -> vector<4x32xf32>
    %c0_4 = arith.constant 0 : index
    %c0_5 = arith.constant 0 : index
    %6 = vector.load %arg2[%c0_4, %c0_5] : memref<32x2xf32, #tpu.memory_space<vmem>>, vector<32x2xf32>
    %cst_6 = arith.constant dense<0.000000e+00> : vector<4x2xf32>
    %7 = tpu.matmul %5, %6, %cst_6 {dimension_numbers = #tpu.dot_dimension_numbers<[1], [0], [0], [1], [0, 0, 1, 1], [], []>} : vector<4x32xf32>, vector<32x2xf32>, vector<4x2xf32> -> vector<4x2xf32>
    %cst_7 = arith.constant 0.000000e+00 : f32
    %8 = vector.broadcast %cst_7 : f32 to vector<4x2xf32>
    %9 = arith.maximumf %7, %8 : vector<4x2xf32>
    %c0_8 = arith.constant 0 : index
    %c0_9 = arith.constant 0 : index
    %10 = vector.load %arg3[%c0_8, %c0_9] : memref<2x32xf32, #tpu.memory_space<vmem>>, vector<2x32xf32>
    %cst_10 = arith.constant dense<0.000000e+00> : vector<4x32xf32>
    %11 = tpu.matmul %9, %10, %cst_10 {dimension_numbers = #tpu.dot_dimension_numbers<[1], [0], [0], [1], [0, 0, 1, 1], [], []>} : vector<4x2xf32>, vector<2x32xf32>, vector<4x32xf32> -> vector<4x32xf32>
    %12 = vector.extract_strided_slice %11 {offsets = [0, 0], sizes = [2, 32], strides = [1, 1]} : vector<4x32xf32> to vector<2x32xf32>
    %13 = vector.extract_strided_slice %11 {offsets = [2, 0], sizes = [2, 32], strides = [1, 1]} : vector<4x32xf32> to vector<2x32xf32>
    %14 = arith.addf %12, %13 : vector<2x32xf32>
    %15 = arith.negf %14 : vector<2x32xf32>
    %16 = math.exp %15 : vector<2x32xf32>
    %cst_11 = arith.constant 1.000000e+00 : f32
    %17 = vector.broadcast %cst_11 : f32 to vector<2x32xf32>
    %18 = arith.addf %17, %16 : vector<2x32xf32>
    %19 = arith.divf %17, %18 : vector<2x32xf32>
    %20 = vector.shape_cast %19 : vector<2x32xf32> to vector<2x32x1xf32>
    %21 = vector.broadcast %20 : vector<2x32x1xf32> to vector<2x32x256xf32>
    %22 = arith.mulf %0, %21 : vector<2x32x256xf32>
    %cst_12 = arith.constant dense<0.000000e+00> : vector<2x256xf32>
    %23 = vector.multi_reduction <add>, %22, %cst_12 [1] : vector<2x32x256xf32> to vector<2x256xf32>
    %cst_13 = arith.constant 3.200000e+01 : f32
    %24 = vector.broadcast %cst_13 : f32 to vector<2x256xf32>
    %25 = arith.divf %23, %24 : vector<2x256xf32>
    %cst_14 = arith.constant dense<0xFF800000> : vector<2x256xf32>
    %26 = vector.multi_reduction <maximumf>, %22, %cst_14 [1] : vector<2x32x256xf32> to vector<2x256xf32>
    %27 = tpu.concatenate %25, %26 in 1 : vector<2x256xf32>, vector<2x256xf32> -> vector<2x512xf32>
    %28 = arith.truncf %27 : vector<2x512xf32> to vector<2x512xbf16>
    %c0_15 = arith.constant 0 : index
    %c0_16 = arith.constant 0 : index
    %29 = vector.load %arg4[%c0_15, %c0_16] : memref<512x256xbf16, #tpu.memory_space<vmem>>, vector<512x256xbf16>
    %cst_17 = arith.constant dense<0.000000e+00> : vector<2x256xf32>
    %30 = tpu.matmul %28, %29, %cst_17 {dimension_numbers = #tpu.dot_dimension_numbers<[1], [0], [0], [1], [0, 0, 1, 1], [], []>} : vector<2x512xbf16>, vector<512x256xbf16>, vector<2x256xf32> -> vector<2x256xf32>
    %31 = arith.negf %30 : vector<2x256xf32>
    %32 = math.exp %31 : vector<2x256xf32>
    %cst_18 = arith.constant 1.000000e+00 : f32
    %33 = vector.broadcast %cst_18 : f32 to vector<2x256xf32>
    %34 = arith.addf %33, %32 : vector<2x256xf32>
    %35 = arith.divf %33, %34 : vector<2x256xf32>
    %36 = vector.shape_cast %35 : vector<2x256xf32> to vector<2x1x256xf32>
    %37 = vector.broadcast %36 : vector<2x1x256xf32> to vector<2x32x256xf32>
    %38 = arith.mulf %22, %37 : vector<2x32x256xf32>
    %c0_19 = arith.constant 0 : index
    %c0_20 = arith.constant 0 : index
    %c0_21 = arith.constant 0 : index
    %39 = vector.load %arg5[%c0_19, %c0_20, %c0_21] : memref<2x32x256xf32, #tpu.memory_space<vmem>>, vector<2x32x256xf32>
    tpu.vector_store %arg5[%c0_19, %c0_20, %c0_21], %38 {strides = array<i32>} : memref<2x32x256xf32, #tpu.memory_space<vmem>>, vector<2x32x256xf32>,
    return
  }
  func.func @transform_0(%arg0: i32) -> (i32, i32, i32) {
    %c0_i32 = arith.constant 0 : i32
    %c0_i32_0 = arith.constant 0 : i32
    %c0_i32_1 = arith.constant 0 : i32
    return %arg0, %c0_i32, %c0_i32_0 : i32, i32, i32
  }
  func.func @transform_1(%arg0: i32) -> (i32, i32) {
    %c0_i32 = arith.constant 0 : i32
    %c0_i32_0 = arith.constant 0 : i32
    %c0_i32_1 = arith.constant 0 : i32
    return %c0_i32, %c0_i32_0 : i32, i32
  }
  func.func @transform_2(%arg0: i32) -> (i32, i32) {
    %c0_i32 = arith.constant 0 : i32
    %c0_i32_0 = arith.constant 0 : i32
    %c0_i32_1 = arith.constant 0 : i32
    return %c0_i32, %c0_i32_0 : i32, i32
  }
  func.func @transform_3(%arg0: i32) -> (i32, i32) {
    %c0_i32 = arith.constant 0 : i32
    %c0_i32_0 = arith.constant 0 : i32
    %c0_i32_1 = arith.constant 0 : i32
    return %c0_i32, %c0_i32_0 : i32, i32
  }
  func.func @transform_4(%arg0: i32) -> (i32, i32, i32) {
    %c0_i32 = arith.constant 0 : i32
    %c0_i32_0 = arith.constant 0 : i32
    %c0_i32_1 = arith.constant 0 : i32
    return %arg0, %c0_i32, %c0_i32_0 : i32, i32, i32
  }
}

</mosaic_0001>

<llo_original>
// kernel: tpu_custom_call.1
$region0: #{tpu_custom_call.1}
  #allocation0 [shape = 'u32[]', space=smem, size = 0x4, offset = 0x4, fixed_abs, tag = 'smem constant byte address 0x4 - core index']
  #allocation1 [shape = 'u32[144,128]{1,0:T(1,128)}', space=vmem, size = 0x12000, scoped, tag = 'internal scratch']
  %s0 = inlined_call_operand.hbm [shape: f32[2,32,256], index: 0, kind: input, shape index: {}]
  %s1 = inlined_call_operand.vmem [shape: f32[32,2], index: 1, kind: input, shape index: {}]
  %s2 = inlined_call_operand.vmem [shape: f32[2,32], index: 2, kind: input, shape index: {}]
  %s3 = inlined_call_operand.hbm [shape: bf16[512,256], index: 3, kind: input, shape index: {}]
  %s4 = inlined_call_operand.hbm [shape: f32[2,32,256], index: 4, kind: output, shape index: {}]
  %s5 = sld [smem:[#allocation0]]
  $region34: #{tpu_custom_call.1} parent=0
    _
  %s7 = ssub.s32 1, %s5
  %s8 = scalar_select 0, %s7, %s5
  $region1: #{tpu_custom_call.1} parent=0
    #allocation2 [shape = 'u8[65536]{0}', space=vmem, size = 0x10000, scoped, tag = 'input window, operand 0, single buffered']
    #allocation3 [shape = 's32[1]{0}', space=sflag, size = 0x4, scoped, tag = 'scoped memory for tpu_custom_call.1']
    #allocation4 [shape = 's32[1]{0}', space=sflag, size = 0x4, scoped, tag = 'scoped memory for tpu_custom_call.1']
    #allocation5 [shape = 'u8[262144]{0}', space=vmem, size = 0x40000, scoped, tag = 'input window, operand 3, single buffered']
    #allocation6 [shape = 's32[1]{0}', space=sflag, size = 0x4, scoped, tag = 'scoped memory for tpu_custom_call.1']
    #allocation7 [shape = 'u8[65536]{0}', space=vmem, size = 0x10000, scoped, tag = 'output window, operand 0, single buffered']
    %9 = vsyncpa [#allocation3], 0
    %10 = vsyncpa [#allocation6], 0
    %11 = vsyncpa [#allocation4], 0
    // Predicated region
    $region2: #{tpu_custom_call.1} parent=1 // pred_check
      _
    $region3: #{tpu_custom_call.1} parent=1 // pred_check_branch
      %13 = sbr.rel (0) target = $region5
    $region4: #{tpu_custom_call.1} parent=1 // pred_region
      %s15 = ssub.s32 2048, 2048
      %16 = vsyncadd [#allocation3], %s15
      %s17 = sshll.u32 [#allocation2], 4
      %s18 = int_to_ptr.vmem [resolvable:$true] %s17
      %23 = dma.hbm_to_vmem [thread:$0]  %s0, 2048, %s18, [#allocation3], 256, 256, 16
    $region5: #{tpu_custom_call.1} parent=1 // pred_fallthru
      _
    // Predicated region
    $region6: #{tpu_custom_call.1} parent=1 // pred_check
      _
    $region7: #{tpu_custom_call.1} parent=1 // pred_check_branch
      %25 = sbr.rel (0) target = $region9
    $region8: #{tpu_custom_call.1} parent=1 // pred_region
      _
    $region9: #{tpu_custom_call.1} parent=1 // pred_fallthru
      _
    // Predicated region
    $region10: #{tpu_custom_call.1} parent=1 // pred_check
      _
    $region11: #{tpu_custom_call.1} parent=1 // pred_check_branch
      %27 = sbr.rel (0) target = $region13
    $region12: #{tpu_custom_call.1} parent=1 // pred_region
      _
    $region13: #{tpu_custom_call.1} parent=1 // pred_fallthru
      _
    // Predicated region
    $region14: #{tpu_custom_call.1} parent=1 // pred_check
      _
    $region15: #{tpu_custom_call.1} parent=1 // pred_check_branch
      %29 = sbr.rel (0) target = $region17
    $region16: #{tpu_custom_call.1} parent=1 // pred_region
      %s31 = ssub.s32 8192, 8192
      %32 = vsyncadd [#allocation6], %s31
      %s33 = sshll.u32 [#allocation5], 4
      %s34 = int_to_ptr.vmem [resolvable:$true] %s33
      %39 = dma.hbm_to_vmem [thread:$0]  %s3, 8192, %s34, [#allocation6], 128, 128, 8
    $region17: #{tpu_custom_call.1} parent=1 // pred_fallthru
      _
    // Predicated region
    $region18: #{tpu_custom_call.1} parent=1 // pred_check
      _
    $region19: #{tpu_custom_call.1} parent=1 // pred_check_branch
      %41 = sbr.rel (0) target = $region21
    $region20: #{tpu_custom_call.1} parent=1 // pred_region
      %42 = dma.done [#allocation3], 2048
    $region21: #{tpu_custom_call.1} parent=1 // pred_fallthru
      _
    // Predicated region
    $region22: #{tpu_custom_call.1} parent=1 // pred_check
      _
    $region23: #{tpu_custom_call.1} parent=1 // pred_check_branch
      %44 = sbr.rel (0) target = $region25
    $region24: #{tpu_custom_call.1} parent=1 // pred_region
      %45 = dma.done [#allocation6], 8192
    $region25: #{tpu_custom_call.1} parent=1 // pred_fallthru
      _
    %v46 = vld [vmem:[#allocation2] sm:$0xff]
    %v47 = vld [vmem:[#allocation2 + $0x8] sm:$0xff]
    %v48 = vld [vmem:[#allocation2 + $0x10] sm:$0xff]
    %v49 = vld [vmem:[#allocation2 + $0x18] sm:$0xff]
    %v50 = vld [vmem:[#allocation2 + $0x20] sm:$0xff]
    %v51 = vld [vmem:[#allocation2 + $0x28] sm:$0xff]
    %v52 = vld [vmem:[#allocation2 + $0x30] sm:$0xff]
    %v53 = vld [vmem:[#allocation2 + $0x38] sm:$0xff]
    %v54 = vld [vmem:[#allocation2 + $0x40] sm:$0xff]
    %v55 = vld [vmem:[#allocation2 + $0x48] sm:$0xff]
    %v56 = vld [vmem:[#allocation2 + $0x50] sm:$0xff]
    %v57 = vld [vmem:[#allocation2 + $0x58] sm:$0xff]
    %v58 = vld [vmem:[#allocation2 + $0x60] sm:$0xff]
    %v59 = vld [vmem:[#allocation2 + $0x68] sm:$0xff]
    %v60 = vld [vmem:[#allocation2 + $0x70] sm:$0xff]
    %v61 = vld [vmem:[#allocation2 + $0x78] sm:$0xff]
    %v62 = vadd.f32 %v46, %v47
    %63 = vadd.xlane.f32.xlu0 %v62
    %v64 = vpop.xlane.xlu0 %63
    %v65 = vadd.f32 %v48, %v49
    %66 = vadd.xlane.f32.xlu0 %v65
    %v67 = vpop.xlane.xlu0 %66
    %v68 = vadd.f32 %v50, %v51
    %69 = vadd.xlane.f32.xlu0 %v68
    %v70 = vpop.xlane.xlu0 %69
    %v71 = vadd.f32 %v52, %v53
    %72 = vadd.xlane.f32.xlu0 %v71
    %v73 = vpop.xlane.xlu0 %72
    %v74 = vadd.f32 %v54, %v55
    %75 = vadd.xlane.f32.xlu0 %v74
    %v76 = vpop.xlane.xlu0 %75
    %v77 = vadd.f32 %v56, %v57
    %78 = vadd.xlane.f32.xlu0 %v77
    %v79 = vpop.xlane.xlu0 %78
    %v80 = vadd.f32 %v58, %v59
    %81 = vadd.xlane.f32.xlu0 %v80
    %v82 = vpop.xlane.xlu0 %81
    %v83 = vadd.f32 %v60, %v61
    %84 = vadd.xlane.f32.xlu0 %v83
    %v85 = vpop.xlane.xlu0 %84
    %v86 = vrcp.pop 256.0
    %v87 = vmul.f32 %v64, %v86
    %v88 = vmul.f32 %v67, %v86
    %v89 = vmul.f32 %v70, %v86
    %v90 = vmul.f32 %v73, %v86
    %v91 = vmul.f32 %v76, %v86
    %v92 = vmul.f32 %v79, %v86
    %v93 = vmul.f32 %v82, %v86
    %v94 = vmul.f32 %v85, %v86
    %v95 = vmax.f32 %v46, %v47
    %96 = vmax.xlane.f32.xlu0 %v95
    %v97 = vpop.xlane.xlu0 %96
    %v98 = vmax.f32 %v48, %v49
    %99 = vmax.xlane.f32.xlu0 %v98
    %v100 = vpop.xlane.xlu0 %99
    %v101 = vmax.f32 %v50, %v51
    %102 = vmax.xlane.f32.xlu0 %v101
    %v103 = vpop.xlane.xlu0 %102
    %v104 = vmax.f32 %v52, %v53
    %105 = vmax.xlane.f32.xlu0 %v104
    %v106 = vpop.xlane.xlu0 %105
    %v107 = vmax.f32 %v54, %v55
    %108 = vmax.xlane.f32.xlu0 %v107
    %v109 = vpop.xlane.xlu0 %108
    %v110 = vmax.f32 %v56, %v57
    %111 = vmax.xlane.f32.xlu0 %v110
    %v112 = vpop.xlane.xlu0 %111
    %v113 = vmax.f32 %v58, %v59
    %114 = vmax.xlane.f32.xlu0 %v113
    %v115 = vpop.xlane.xlu0 %114
    %v116 = vmax.f32 %v60, %v61
    %117 = vmax.xlane.f32.xlu0 %v116
    %v118 = vpop.xlane.xlu0 %117
    %v127 = vlaneseq
    %v128 = vand.u32 %v127, 127
    %v129 = vlaneseq
    %v130 = vshrl.u32 %v129, 7
    %v131 = vsub.s32 %v128, %v130
    %v132 = vrot.slane %v87, %v131
    %v133 = vadd.s32 %v128, 4294967288
    %v134 = vlaneseq
    %v135 = vshrl.u32 %v134, 7
    %v136 = vsub.s32 %v133, %v135
    %v137 = vrot.slane %v88, %v136
    %vm138 = vcmask 130112
    %v139 = vsel %vm138, %v137, %v132
    %v140 = vadd.s32 %v128, 4294967280
    %v141 = vlaneseq
    %v142 = vshrl.u32 %v141, 7
    %v143 = vsub.s32 %v140, %v142
    %v144 = vrot.slane %v89, %v143
    %vm145 = vcmask 195712
    %v146 = vsel %vm145, %v144, %v139
    %v147 = vadd.s32 %v128, 4294967272
    %v148 = vlaneseq
    %v149 = vshrl.u32 %v148, 7
    %v150 = vsub.s32 %v147, %v149
    %v151 = vrot.slane %v90, %v150
    %vm152 = vcmask 261312
    %v153 = vsel %vm152, %v151, %v146
    %v154 = vlaneseq
    %v155 = vshrl.u32 %v154, 7
    %v156 = vsub.s32 %v128, %v155
    %v157 = vrot.slane %v91, %v156
    %v158 = vlaneseq
    %v159 = vshrl.u32 %v158, 7
    %v160 = vsub.s32 %v133, %v159
    %v161 = vrot.slane %v92, %v160
    %v162 = vsel %vm138, %v161, %v157
    %v163 = vlaneseq
    %v164 = vshrl.u32 %v163, 7
    %v165 = vsub.s32 %v140, %v164
    %v166 = vrot.slane %v93, %v165
    %v167 = vsel %vm145, %v166, %v162
    %v168 = vlaneseq
    %v169 = vshrl.u32 %v168, 7
    %v170 = vsub.s32 %v147, %v169
    %v171 = vrot.slane %v94, %v170
    %v172 = vsel %vm152, %v171, %v167
    %vm173 = vcmask 1041409
    %v174 = vsel %vm173, %v172, %v153
    %v184 = vlaneseq
    %v185 = vshrl.u32 %v184, 7
    %v186 = vsub.s32 %v128, %v185
    %v187 = vrot.slane %v97, %v186
    %v188 = vlaneseq
    %v189 = vshrl.u32 %v188, 7
    %v190 = vsub.s32 %v133, %v189
    %v191 = vrot.slane %v100, %v190
    %v192 = vsel %vm138, %v191, %v187
    %v193 = vlaneseq
    %v194 = vshrl.u32 %v193, 7
    %v195 = vsub.s32 %v140, %v194
    %v196 = vrot.slane %v103, %v195
    %v197 = vsel %vm145, %v196, %v192
    %v198 = vlaneseq
    %v199 = vshrl.u32 %v198, 7
    %v200 = vsub.s32 %v147, %v199
    %v201 = vrot.slane %v106, %v200
    %v202 = vsel %vm152, %v201, %v197
    %v203 = vlaneseq
    %v204 = vshrl.u32 %v203, 7
    %v205 = vsub.s32 %v128, %v204
    %v206 = vrot.slane %v109, %v205
    %v207 = vlaneseq
    %v208 = vshrl.u32 %v207, 7
    %v209 = vsub.s32 %v133, %v208
    %v210 = vrot.slane %v112, %v209
    %v211 = vsel %vm138, %v210, %v206
    %v212 = vlaneseq
    %v213 = vshrl.u32 %v212, 7
    %v214 = vsub.s32 %v140, %v213
    %v215 = vrot.slane %v115, %v214
    %v216 = vsel %vm145, %v215, %v211
    %v217 = vlaneseq
    %v218 = vshrl.u32 %v217, 7
    %v219 = vsub.s32 %v147, %v218
    %v220 = vrot.slane %v118, %v219
    %v221 = vsel %vm152, %v220, %v216
    %vm222 = vcmask 1043459
    %v223 = vsel %vm222, %v221, %v202
    %vm225 = vcmask 1041408
    %v226 = vsel %vm225, %v174, %v223
    %v227 = vld [vmem:[%s1] sm:$0xff]
    %v228 = vld [vmem:[%s1 + $0x8] sm:$0xff]
    %v229 = vld [vmem:[%s1 + $0x10] sm:$0xff]
    %v230 = vld [vmem:[%s1 + $0x18] sm:$0xff]
    %vm231 = vcmask 261120
    %v233 = vsel %vm231, %v226, 0
    %235 = vmatprep.subr.mxu0 0.0
    %236 = vmatpush1.msra.mxu0 %v227
    %237 = vmatprep.subr.mxu0 0.0
    %238 = vmatpush1.msra.mxu0 %v228
    %239 = vmatprep.subr.mxu0 0.0
    %240 = vmatpush1.msra.mxu0 %v229
    %241 = vmatprep.subr.mxu0 0.0
    %242 = vmatpush1.msra.mxu0 %v230
    %243 = vmatprep.subr.mxu0 0.0
    %244 = vmatpush1.msra.mxu0 0.0
    %245 = vmatprep.subr.mxu0 0.0
    %246 = vmatpush1.msra.mxu0 0.0
    %247 = vmatprep.subr.mxu0 0.0
    %248 = vmatpush1.msra.mxu0 0.0
    %249 = vmatprep.subr.mxu0 0.0
    %250 = vmatpush1.msra.mxu0 0.0
    %251 = vmatprep.subr.mxu0 0.0
    %252 = vmatpush1.msra.mxu0 0.0
    %253 = vmatprep.subr.mxu0 0.0
    %254 = vmatpush1.msra.mxu0 0.0
    %255 = vmatprep.subr.mxu0 0.0
    %256 = vmatpush1.msra.mxu0 0.0
    %257 = vmatprep.subr.mxu0 0.0
    %258 = vmatpush1.msra.mxu0 0.0
    %259 = vmatprep.subr.mxu0 0.0
    %260 = vmatpush1.msra.mxu0 0.0
    %261 = vmatprep.subr.mxu0 0.0
    %262 = vmatpush1.msra.mxu0 0.0
    %263 = vmatprep.subr.mxu0 0.0
    %264 = vmatpush1.msra.mxu0 0.0
    %265 = vmatprep.subr.mxu0 0.0
    %266 = vmatpush1.msra.mxu0 0.0
    %267 = vmatprep.subr.mxu0 0.0
    %268 = vmatpush1.msra.mxu0 0.0
    %269 = vmatprep.subr.mxu0 0.0
    %270 = vmatpush1.msra.mxu0 0.0
    %271 = vmatprep.subr.mxu0 0.0
    %272 = vmatpush1.msra.mxu0 0.0
    %273 = vmatprep.subr.mxu0 0.0
    %274 = vmatpush1.msra.mxu0 0.0
    %275 = vmatprep.subr.mxu0 0.0
    %276 = vmatpush1.msra.mxu0 0.0
    %277 = vmatprep.subr.mxu0 0.0
    %278 = vmatpush1.msra.mxu0 0.0
    %279 = vmatprep.subr.mxu0 0.0
    %280 = vmatpush1.msra.mxu0 0.0
    %281 = vmatprep.subr.mxu0 0.0
    %282 = vmatpush1.msra.mxu0 0.0
    %283 = vmatprep.subr.mxu0 0.0
    %284 = vmatpush1.msra.mxu0 0.0
    %285 = vmatprep.subr.mxu0 0.0
    %286 = vmatpush1.msra.mxu0 0.0
    %287 = vmatprep.subr.mxu0 0.0
    %288 = vmatpush1.msra.mxu0 0.0
    %289 = vmatprep.subr.mxu0 0.0
    %290 = vmatpush1.msra.mxu0 0.0
    %291 = vmatprep.subr.mxu0 0.0
    %292 = vmatpush1.msra.mxu0 0.0
    %293 = vmatprep.subr.mxu0 0.0
    %294 = vmatpush1.msra.mxu0 0.0
    %295 = vmatprep.subr.mxu0 0.0
    %296 = vmatpush1.msra.mxu0 0.0
    %297 = vmatprep.subr.mxu0 0.0
    %298 = vmatpush1.msra.mxu0 0.0
    %299 = vmatprep.mubr.f32.mxu0 0.0
    %300 = vmatmul.mubr.f32.gmra.mrb[0].mxu0 %v233
    %v301 = vpop.f32.mrb[0].mxu0
    %v302 = vadd.f32 0.0, %v301
    %v303 = vpop.f32.mrb[0].mxu0
    %304 = vdwg.mxu0
    %v305 = vmax.f32 %v302, 0.0
    %v306 = vld [vmem:[%s2] sm:$0x3]
    %vm307 = vcmask 15360
    %v309 = vsel %vm307, %v305, 0
    %v312 = vsel %vm225, %v306, 0
    %314 = vmatprep.subr.mxu0 0.0
    %315 = vmatpush1.msra.mxu0 %v312
    %316 = vmatprep.subr.mxu0 0.0
    %317 = vmatpush1.msra.mxu0 0.0
    %318 = vmatprep.subr.mxu0 0.0
    %319 = vmatpush1.msra.mxu0 0.0
    %320 = vmatprep.subr.mxu0 0.0
    %321 = vmatpush1.msra.mxu0 0.0
    %322 = vmatprep.subr.mxu0 0.0
    %323 = vmatpush1.msra.mxu0 0.0
    %324 = vmatprep.subr.mxu0 0.0
    %325 = vmatpush1.msra.mxu0 0.0
    %326 = vmatprep.subr.mxu0 0.0
    %327 = vmatpush1.msra.mxu0 0.0
    %328 = vmatprep.subr.mxu0 0.0
    %329 = vmatpush1.msra.mxu0 0.0
    %330 = vmatprep.subr.mxu0 0.0
    %331 = vmatpush1.msra.mxu0 0.0
    %332 = vmatprep.subr.mxu0 0.0
    %333 = vmatpush1.msra.mxu0 0.0
    %334 = vmatprep.subr.mxu0 0.0
    %335 = vmatpush1.msra.mxu0 0.0
    %336 = vmatprep.subr.mxu0 0.0
    %337 = vmatpush1.msra.mxu0 0.0
    %338 = vmatprep.subr.mxu0 0.0
    %339 = vmatpush1.msra.mxu0 0.0
    %340 = vmatprep.subr.mxu0 0.0
    %341 = vmatpush1.msra.mxu0 0.0
    %342 = vmatprep.subr.mxu0 0.0
    %343 = vmatpush1.msra.mxu0 0.0
    %344 = vmatprep.subr.mxu0 0.0
    %345 = vmatpush1.msra.mxu0 0.0
    %346 = vmatprep.subr.mxu0 0.0
    %347 = vmatpush1.msra.mxu0 0.0
    %348 = vmatprep.subr.mxu0 0.0
    %349 = vmatpush1.msra.mxu0 0.0
    %350 = vmatprep.subr.mxu0 0.0
    %351 = vmatpush1.msra.mxu0 0.0
    %352 = vmatprep.subr.mxu0 0.0
    %353 = vmatpush1.msra.mxu0 0.0
    %354 = vmatprep.subr.mxu0 0.0
    %355 = vmatpush1.msra.mxu0 0.0
    %356 = vmatprep.subr.mxu0 0.0
    %357 = vmatpush1.msra.mxu0 0.0
    %358 = vmatprep.subr.mxu0 0.0
    %359 = vmatpush1.msra.mxu0 0.0
    %360 = vmatprep.subr.mxu0 0.0
    %361 = vmatpush1.msra.mxu0 0.0
    %362 = vmatprep.subr.mxu0 0.0
    %363 = vmatpush1.msra.mxu0 0.0
    %364 = vmatprep.subr.mxu0 0.0
    %365 = vmatpush1.msra.mxu0 0.0
    %366 = vmatprep.subr.mxu0 0.0
    %367 = vmatpush1.msra.mxu0 0.0
    %368 = vmatprep.subr.mxu0 0.0
    %369 = vmatpush1.msra.mxu0 0.0
    %370 = vmatprep.subr.mxu0 0.0
    %371 = vmatpush1.msra.mxu0 0.0
    %372 = vmatprep.subr.mxu0 0.0
    %373 = vmatpush1.msra.mxu0 0.0
    %374 = vmatprep.subr.mxu0 0.0
    %375 = vmatpush1.msra.mxu0 0.0
    %376 = vmatprep.subr.mxu0 0.0
    %377 = vmatpush1.msra.mxu0 0.0
    %378 = vmatprep.mubr.f32.mxu0 0.0
    %379 = vmatmul.mubr.f32.gmra.mrb[0].mxu0 %v309
    %v380 = vpop.f32.mrb[0].mxu0
    %v381 = vadd.f32 0.0, %v380
    %v382 = vpop.f32.mrb[0].mxu0
    %383 = vdwg.mxu0
    %v385 = vrot.slane %v381, 2
    %v387 = vadd.f32 %v381, %v385
    %v388 = vxor.u32 %v387, 2147483648
    %v389 = vmul.f32 %v388, 1.442695
    %v390 = vpow.pop %v389
    %v391 = vadd.f32 %v390, 1.0
    %v392 = vrcp.pop %v391
    %v393 = vmul.f32 1.0, %v392
    %v394 = vlaneseq
    %v395 = vshrl.u32 %v394, 7
    %v396 = vsub.s32 0, %v395
    %v397 = vrot.slane %v393, %v396
    %399 = vbcast.lane.b32.xlu0 %v397, 256
    %v400 = vpop.permute.xlu0 %399
    %s402 = sor.u32 256, 8
    %403 = vbcast.lane.b32.xlu0 %v397, %s402
    %v404 = vpop.permute.xlu0 %403
    %s406 = sor.u32 256, 16
    %407 = vbcast.lane.b32.xlu0 %v397, %s406
    %v408 = vpop.permute.xlu0 %407
    %s410 = sor.u32 256, 24
    %411 = vbcast.lane.b32.xlu0 %v397, %s410
    %v412 = vpop.permute.xlu0 %411
    %v413 = vlaneseq
    %v414 = vshrl.u32 %v413, 7
    %v415 = vsub.s32 1, %v414
    %v416 = vrot.slane %v393, %v415
    %418 = vbcast.lane.b32.xlu0 %v416, 256
    %v419 = vpop.permute.xlu0 %418
    %s421 = sor.u32 256, 8
    %422 = vbcast.lane.b32.xlu0 %v416, %s421
    %v423 = vpop.permute.xlu0 %422
    %s425 = sor.u32 256, 16
    %426 = vbcast.lane.b32.xlu0 %v416, %s425
    %v427 = vpop.permute.xlu0 %426
    %s429 = sor.u32 256, 24
    %430 = vbcast.lane.b32.xlu0 %v416, %s429
    %v431 = vpop.permute.xlu0 %430
    %v432 = vmul.f32 %v46, %v400
    %v433 = vmul.f32 %v47, %v400
    %v434 = vmul.f32 %v48, %v404
    %v435 = vmul.f32 %v49, %v404
    %v436 = vmul.f32 %v50, %v408
    %v437 = vmul.f32 %v51, %v408
    %v438 = vmul.f32 %v52, %v412
    %v439 = vmul.f32 %v53, %v412
    %v440 = vmul.f32 %v54, %v419
    %v441 = vmul.f32 %v55, %v419
    %v442 = vmul.f32 %v56, %v423
    %v443 = vmul.f32 %v57, %v423
    %v444 = vmul.f32 %v58, %v427
    %v445 = vmul.f32 %v59, %v427
    %v446 = vmul.f32 %v60, %v431
    %v447 = vmul.f32 %v61, %v431
    %v448 = vadd.f32 %v432, %v434
    %v449 = vadd.f32 %v448, %v436
    %v450 = vadd.f32 %v449, %v438
    %v451 = vrot.slane %v450, 4
    %v452 = vadd.f32 %v450, %v451
    %v453 = vrot.slane %v452, 2
    %v454 = vadd.f32 %v452, %v453
    %v455 = vrot.slane %v454, 1
    %v456 = vadd.f32 %v454, %v455
    %v457 = vadd.f32 %v433, %v435
    %v458 = vadd.f32 %v457, %v437
    %v459 = vadd.f32 %v458, %v439
    %v460 = vrot.slane %v459, 4
    %v461 = vadd.f32 %v459, %v460
    %v462 = vrot.slane %v461, 2
    %v463 = vadd.f32 %v461, %v462
    %v464 = vrot.slane %v463, 1
    %v465 = vadd.f32 %v463, %v464
    %v466 = vadd.f32 %v440, %v442
    %v467 = vadd.f32 %v466, %v444
    %v468 = vadd.f32 %v467, %v446
    %v469 = vrot.slane %v468, 4
    %v470 = vadd.f32 %v468, %v469
    %v471 = vrot.slane %v470, 2
    %v472 = vadd.f32 %v470, %v471
    %v473 = vrot.slane %v472, 1
    %v474 = vadd.f32 %v472, %v473
    %v475 = vadd.f32 %v441, %v443
    %v476 = vadd.f32 %v475, %v445
    %v477 = vadd.f32 %v476, %v447
    %v478 = vrot.slane %v477, 4
    %v479 = vadd.f32 %v477, %v478
    %v480 = vrot.slane %v479, 2
    %v481 = vadd.f32 %v479, %v480
    %v482 = vrot.slane %v481, 1
    %v483 = vadd.f32 %v481, %v482
    %v484 = vrcp.pop 32.0
    %v485 = vmul.f32 %v456, %v484
    %v486 = vmul.f32 %v465, %v484
    %v487 = vmul.f32 %v474, %v484
    %v488 = vmul.f32 %v483, %v484
    %v489 = vmax.f32 %v432, %v434
    %v490 = vmax.f32 %v489, %v436
    %v491 = vmax.f32 %v490, %v438
    %v492 = vrot.slane %v491, 4
    %v493 = vmax.f32 %v491, %v492
    %v494 = vrot.slane %v493, 2
    %v495 = vmax.f32 %v493, %v494
    %v496 = vrot.slane %v495, 1
    %v497 = vmax.f32 %v495, %v496
    %v498 = vmax.f32 %v433, %v435
    %v499 = vmax.f32 %v498, %v437
    %v500 = vmax.f32 %v499, %v439
    %v501 = vrot.slane %v500, 4
    %v502 = vmax.f32 %v500, %v501
    %v503 = vrot.slane %v502, 2
    %v504 = vmax.f32 %v502, %v503
    %v505 = vrot.slane %v504, 1
    %v506 = vmax.f32 %v504, %v505
    %v507 = vmax.f32 %v440, %v442
    %v508 = vmax.f32 %v507, %v444
    %v509 = vmax.f32 %v508, %v446
    %v510 = vrot.slane %v509, 4
    %v511 = vmax.f32 %v509, %v510
    %v512 = vrot.slane %v511, 2
    %v513 = vmax.f32 %v511, %v512
    %v514 = vrot.slane %v513, 1
    %v515 = vmax.f32 %v513, %v514
    %v516 = vmax.f32 %v441, %v443
    %v517 = vmax.f32 %v516, %v445
    %v518 = vmax.f32 %v517, %v447
    %v519 = vrot.slane %v518, 4
    %v520 = vmax.f32 %v518, %v519
    %v521 = vrot.slane %v520, 2
    %v522 = vmax.f32 %v520, %v521
    %v523 = vrot.slane %v522, 1
    %v524 = vmax.f32 %v522, %v523
    %v529 = vsel %vm173, %v487, %v485
    %v530 = vsel %vm173, %v488, %v486
    %v537 = vsel %vm173, %v515, %v497
    %v538 = vsel %vm173, %v524, %v506
    %v541 = vpack.c.bf16 %v529, %v529
    %v542 = vpack.c.bf16 %v530, %v530
    %v543 = vpack.c.bf16 %v537, %v537
    %v544 = vpack.c.bf16 %v538, %v538
    %v545 = vld [vmem:[#allocation5] sm:$0xff]
    %v546 = vld [vmem:[#allocation5 + $0x8] sm:$0xff]
    %v547 = vld [vmem:[#allocation5 + $0x10] sm:$0xff]
    %v548 = vld [vmem:[#allocation5 + $0x18] sm:$0xff]
    %v549 = vld [vmem:[#allocation5 + $0x20] sm:$0xff]
    %v550 = vld [vmem:[#allocation5 + $0x28] sm:$0xff]
    %v551 = vld [vmem:[#allocation5 + $0x30] sm:$0xff]
    %v552 = vld [vmem:[#allocation5 + $0x38] sm:$0xff]
    %v553 = vld [vmem:[#allocation5 + $0x40] sm:$0xff]
    %v554 = vld [vmem:[#allocation5 + $0x48] sm:$0xff]
    %v555 = vld [vmem:[#allocation5 + $0x50] sm:$0xff]
    %v556 = vld [vmem:[#allocation5 + $0x58] sm:$0xff]
    %v557 = vld [vmem:[#allocation5 + $0x60] sm:$0xff]
    %v558 = vld [vmem:[#allocation5 + $0x68] sm:$0xff]
    %v559 = vld [vmem:[#allocation5 + $0x70] sm:$0xff]
    %v560 = vld [vmem:[#allocation5 + $0x78] sm:$0xff]
    %v561 = vld [vmem:[#allocation5 + $0x80] sm:$0xff]
    %v562 = vld [vmem:[#allocation5 + $0x88] sm:$0xff]
    %v563 = vld [vmem:[#allocation5 + $0x90] sm:$0xff]
    %v564 = vld [vmem:[#allocation5 + $0x98] sm:$0xff]
    %v565 = vld [vmem:[#allocation5 + $0xa0] sm:$0xff]
    %v566 = vld [vmem:[#allocation5 + $0xa8] sm:$0xff]
    %v567 = vld [vmem:[#allocation5 + $0xb0] sm:$0xff]
    %v568 = vld [vmem:[#allocation5 + $0xb8] sm:$0xff]
    %v569 = vld [vmem:[#allocation5 + $0xc0] sm:$0xff]
    %v570 = vld [vmem:[#allocation5 + $0xc8] sm:$0xff]
    %v571 = vld [vmem:[#allocation5 + $0xd0] sm:$0xff]
    %v572 = vld [vmem:[#allocation5 + $0xd8] sm:$0xff]
    %v573 = vld [vmem:[#allocation5 + $0xe0] sm:$0xff]
    %v574 = vld [vmem:[#allocation5 + $0xe8] sm:$0xff]
    %v575 = vld [vmem:[#allocation5 + $0xf0] sm:$0xff]
    %v576 = vld [vmem:[#allocation5 + $0xf8] sm:$0xff]
    %v577 = vld [vmem:[#allocation5 + $0x100] sm:$0xff]
    %v578 = vld [vmem:[#allocation5 + $0x108] sm:$0xff]
    %v579 = vld [vmem:[#allocation5 + $0x110] sm:$0xff]
    %v580 = vld [vmem:[#allocation5 + $0x118] sm:$0xff]
    %v581 = vld [vmem:[#allocation5 + $0x120] sm:$0xff]
    %v582 = vld [vmem:[#allocation5 + $0x128] sm:$0xff]
    %v583 = vld [vmem:[#allocation5 + $0x130] sm:$0xff]
    %v584 = vld [vmem:[#allocation5 + $0x138] sm:$0xff]
    %v585 = vld [vmem:[#allocation5 + $0x140] sm:$0xff]
    %v586 = vld [vmem:[#allocation5 + $0x148] sm:$0xff]
    %v587 = vld [vmem:[#allocation5 + $0x150] sm:$0xff]
    %v588 = vld [vmem:[#allocation5 + $0x158] sm:$0xff]
    %v589 = vld [vmem:[#allocation5 + $0x160] sm:$0xff]
    %v590 = vld [vmem:[#allocation5 + $0x168] sm:$0xff]
    %v591 = vld [vmem:[#allocation5 + $0x170] sm:$0xff]
    %v592 = vld [vmem:[#allocation5 + $0x178] sm:$0xff]
    %v593 = vld [vmem:[#allocation5 + $0x180] sm:$0xff]
    %v594 = vld [vmem:[#allocation5 + $0x188] sm:$0xff]
    %v595 = vld [vmem:[#allocation5 + $0x190] sm:$0xff]
    %v596 = vld [vmem:[#allocation5 + $0x198] sm:$0xff]
    %v597 = vld [vmem:[#allocation5 + $0x1a0] sm:$0xff]
    %v598 = vld [vmem:[#allocation5 + $0x1a8] sm:$0xff]
    %v599 = vld [vmem:[#allocation5 + $0x1b0] sm:$0xff]
    %v600 = vld [vmem:[#allocation5 + $0x1b8] sm:$0xff]
    %v601 = vld [vmem:[#allocation5 + $0x1c0] sm:$0xff]
    %v602 = vld [vmem:[#allocation5 + $0x1c8] sm:$0xff]
    %v603 = vld [vmem:[#allocation5 + $0x1d0] sm:$0xff]
    %v604 = vld [vmem:[#allocation5 + $0x1d8] sm:$0xff]
    %v605 = vld [vmem:[#allocation5 + $0x1e0] sm:$0xff]
    %v606 = vld [vmem:[#allocation5 + $0x1e8] sm:$0xff]
    %v607 = vld [vmem:[#allocation5 + $0x1f0] sm:$0xff]
    %v608 = vld [vmem:[#allocation5 + $0x1f8] sm:$0xff]
    %v673 = vunpack.c.l.b16 %v545
    %v674 = vunpack.c.h.b16 %v545
    %v675 = vunpack.c.l.b16 %v546
    %v676 = vunpack.c.h.b16 %v546
    %v677 = vunpack.c.l.b16 %v547
    %v678 = vunpack.c.h.b16 %v547
    %v679 = vunpack.c.l.b16 %v548
    %v680 = vunpack.c.h.b16 %v548
    %v681 = vunpack.c.l.b16 %v549
    %v682 = vunpack.c.h.b16 %v549
    %v683 = vunpack.c.l.b16 %v550
    %v684 = vunpack.c.h.b16 %v550
    %v685 = vunpack.c.l.b16 %v551
    %v686 = vunpack.c.h.b16 %v551
    %v687 = vunpack.c.l.b16 %v552
    %v688 = vunpack.c.h.b16 %v552
    %v689 = vunpack.c.l.b16 %v553
    %v690 = vunpack.c.h.b16 %v553
    %v691 = vunpack.c.l.b16 %v554
    %v692 = vunpack.c.h.b16 %v554
    %v693 = vunpack.c.l.b16 %v555
    %v694 = vunpack.c.h.b16 %v555
    %v695 = vunpack.c.l.b16 %v556
    %v696 = vunpack.c.h.b16 %v556
    %v697 = vunpack.c.l.b16 %v557
    %v698 = vunpack.c.h.b16 %v557
    %v699 = vunpack.c.l.b16 %v558
    %v700 = vunpack.c.h.b16 %v558
    %v701 = vunpack.c.l.b16 %v559
    %v702 = vunpack.c.h.b16 %v559
    %v703 = vunpack.c.l.b16 %v560
    %v704 = vunpack.c.h.b16 %v560
    %v705 = vunpack.c.l.b16 %v561
    %v706 = vunpack.c.h.b16 %v561
    %v707 = vunpack.c.l.b16 %v562
    %v708 = vunpack.c.h.b16 %v562
    %v709 = vunpack.c.l.b16 %v563
    %v710 = vunpack.c.h.b16 %v563
    %v711 = vunpack.c.l.b16 %v564
    %v712 = vunpack.c.h.b16 %v564
    %v713 = vunpack.c.l.b16 %v565
    %v714 = vunpack.c.h.b16 %v565
    %v715 = vunpack.c.l.b16 %v566
    %v716 = vunpack.c.h.b16 %v566
    %v717 = vunpack.c.l.b16 %v567
    %v718 = vunpack.c.h.b16 %v567
    %v719 = vunpack.c.l.b16 %v568
    %v720 = vunpack.c.h.b16 %v568
    %v721 = vunpack.c.l.b16 %v569
    %v722 = vunpack.c.h.b16 %v569
    %v723 = vunpack.c.l.b16 %v570
    %v724 = vunpack.c.h.b16 %v570
    %v725 = vunpack.c.l.b16 %v571
    %v726 = vunpack.c.h.b16 %v571
    %v727 = vunpack.c.l.b16 %v572
    %v728 = vunpack.c.h.b16 %v572
    %v729 = vunpack.c.l.b16 %v573
    %v730 = vunpack.c.h.b16 %v573
    %v731 = vunpack.c.l.b16 %v574
    %v732 = vunpack.c.h.b16 %v574
    %v733 = vunpack.c.l.b16 %v575
    %v734 = vunpack.c.h.b16 %v575
    %v735 = vunpack.c.l.b16 %v576
    %v736 = vunpack.c.h.b16 %v576
    %v737 = vunpack.c.l.b16 %v577
    %v738 = vunpack.c.h.b16 %v577
    %v739 = vunpack.c.l.b16 %v578
    %v740 = vunpack.c.h.b16 %v578
    %v741 = vunpack.c.l.b16 %v579
    %v742 = vunpack.c.h.b16 %v579
    %v743 = vunpack.c.l.b16 %v580
    %v744 = vunpack.c.h.b16 %v580
    %v745 = vunpack.c.l.b16 %v581
    %v746 = vunpack.c.h.b16 %v581
    %v747 = vunpack.c.l.b16 %v582
    %v748 = vunpack.c.h.b16 %v582
    %v749 = vunpack.c.l.b16 %v583
    %v750 = vunpack.c.h.b16 %v583
    %v751 = vunpack.c.l.b16 %v584
    %v752 = vunpack.c.h.b16 %v584
    %v753 = vunpack.c.l.b16 %v585
    %v754 = vunpack.c.h.b16 %v585
    %v755 = vunpack.c.l.b16 %v586
    %v756 = vunpack.c.h.b16 %v586
    %v757 = vunpack.c.l.b16 %v587
    %v758 = vunpack.c.h.b16 %v587
    %v759 = vunpack.c.l.b16 %v588
    %v760 = vunpack.c.h.b16 %v588
    %v761 = vunpack.c.l.b16 %v589
    %v762 = vunpack.c.h.b16 %v589
    %v763 = vunpack.c.l.b16 %v590
    %v764 = vunpack.c.h.b16 %v590
    %v765 = vunpack.c.l.b16 %v591
    %v766 = vunpack.c.h.b16 %v591
    %v767 = vunpack.c.l.b16 %v592
    %v768 = vunpack.c.h.b16 %v592
    %v769 = vunpack.c.l.b16 %v593
    %v770 = vunpack.c.h.b16 %v593
    %v771 = vunpack.c.l.b16 %v594
    %v772 = vunpack.c.h.b16 %v594
    %v773 = vunpack.c.l.b16 %v595
    %v774 = vunpack.c.h.b16 %v595
    %v775 = vunpack.c.l.b16 %v596
    %v776 = vunpack.c.h.b16 %v596
    %v777 = vunpack.c.l.b16 %v597
    %v778 = vunpack.c.h.b16 %v597
    %v779 = vunpack.c.l.b16 %v598
    %v780 = vunpack.c.h.b16 %v598
    %v781 = vunpack.c.l.b16 %v599
    %v782 = vunpack.c.h.b16 %v599
    %v783 = vunpack.c.l.b16 %v600
    %v784 = vunpack.c.h.b16 %v600
    %v785 = vunpack.c.l.b16 %v601
    %v786 = vunpack.c.h.b16 %v601
    %v787 = vunpack.c.l.b16 %v602
    %v788 = vunpack.c.h.b16 %v602
    %v789 = vunpack.c.l.b16 %v603
    %v790 = vunpack.c.h.b16 %v603
    %v791 = vunpack.c.l.b16 %v604
    %v792 = vunpack.c.h.b16 %v604
    %v793 = vunpack.c.l.b16 %v605
    %v794 = vunpack.c.h.b16 %v605
    %v795 = vunpack.c.l.b16 %v606
    %v796 = vunpack.c.h.b16 %v606
    %v797 = vunpack.c.l.b16 %v607
    %v798 = vunpack.c.h.b16 %v607
    %v799 = vunpack.c.l.b16 %v608
    %v800 = vunpack.c.h.b16 %v608
    %v801 = vpack.c.b16 %v675, %v673
    %v802 = vpack.c.b16 %v676, %v674
    %v803 = vpack.c.b16 %v679, %v677
    %v804 = vpack.c.b16 %v680, %v678
    %v805 = vpack.c.b16 %v683, %v681
    %v806 = vpack.c.b16 %v684, %v682
    %v807 = vpack.c.b16 %v687, %v685
    %v808 = vpack.c.b16 %v688, %v686
    %v809 = vpack.c.b16 %v691, %v689
    %v810 = vpack.c.b16 %v692, %v690
    %v811 = vpack.c.b16 %v695, %v693
    %v812 = vpack.c.b16 %v696, %v694
    %v813 = vpack.c.b16 %v699, %v697
    %v814 = vpack.c.b16 %v700, %v698
    %v815 = vpack.c.b16 %v703, %v701
    %v816 = vpack.c.b16 %v704, %v702
    %v817 = vpack.c.b16 %v707, %v705
    %v818 = vpack.c.b16 %v708, %v706
    %v819 = vpack.c.b16 %v711, %v709
    %v820 = vpack.c.b16 %v712, %v710
    %v821 = vpack.c.b16 %v715, %v713
    %v822 = vpack.c.b16 %v716, %v714
    %v823 = vpack.c.b16 %v719, %v717
    %v824 = vpack.c.b16 %v720, %v718
    %v825 = vpack.c.b16 %v723, %v721
    %v826 = vpack.c.b16 %v724, %v722
    %v827 = vpack.c.b16 %v727, %v725
    %v828 = vpack.c.b16 %v728, %v726
    %v829 = vpack.c.b16 %v731, %v729
    %v830 = vpack.c.b16 %v732, %v730
    %v831 = vpack.c.b16 %v735, %v733
    %v832 = vpack.c.b16 %v736, %v734
    %v833 = vpack.c.b16 %v739, %v737
    %v834 = vpack.c.b16 %v740, %v738
    %v835 = vpack.c.b16 %v743, %v741
    %v836 = vpack.c.b16 %v744, %v742
    %v837 = vpack.c.b16 %v747, %v745
    %v838 = vpack.c.b16 %v748, %v746
    %v839 = vpack.c.b16 %v751, %v749
    %v840 = vpack.c.b16 %v752, %v750
    %v841 = vpack.c.b16 %v755, %v753
    %v842 = vpack.c.b16 %v756, %v754
    %v843 = vpack.c.b16 %v759, %v757
    %v844 = vpack.c.b16 %v760, %v758
    %v845 = vpack.c.b16 %v763, %v761
    %v846 = vpack.c.b16 %v764, %v762
    %v847 = vpack.c.b16 %v767, %v765
    %v848 = vpack.c.b16 %v768, %v766
    %v849 = vpack.c.b16 %v771, %v769
    %v850 = vpack.c.b16 %v772, %v770
    %v851 = vpack.c.b16 %v775, %v773
    %v852 = vpack.c.b16 %v776, %v774
    %v853 = vpack.c.b16 %v779, %v777
    %v854 = vpack.c.b16 %v780, %v778
    %v855 = vpack.c.b16 %v783, %v781
    %v856 = vpack.c.b16 %v784, %v782
    %v857 = vpack.c.b16 %v787, %v785
    %v858 = vpack.c.b16 %v788, %v786
    %v859 = vpack.c.b16 %v791, %v789
    %v860 = vpack.c.b16 %v792, %v790
    %v861 = vpack.c.b16 %v795, %v793
    %v862 = vpack.c.b16 %v796, %v794
    %v863 = vpack.c.b16 %v799, %v797
    %v864 = vpack.c.b16 %v800, %v798
    %929 = vmatprep.subr.bf16.mxu0 %v802
    %930 = vmatpush1.bf16.msra.mxu0 %v801
    %931 = vmatprep.subr.bf16.mxu0 %v804
    %932 = vmatpush1.bf16.msra.mxu0 %v803
    %933 = vmatprep.subr.bf16.mxu0 %v806
    %934 = vmatpush1.bf16.msra.mxu0 %v805
    %935 = vmatprep.subr.bf16.mxu0 %v808
    %936 = vmatpush1.bf16.msra.mxu0 %v807
    %937 = vmatprep.subr.bf16.mxu0 %v810
    %938 = vmatpush1.bf16.msra.mxu0 %v809
    %939 = vmatprep.subr.bf16.mxu0 %v812
    %940 = vmatpush1.bf16.msra.mxu0 %v811
    %941 = vmatprep.subr.bf16.mxu0 %v814
    %942 = vmatpush1.bf16.msra.mxu0 %v813
    %943 = vmatprep.subr.bf16.mxu0 %v816
    %944 = vmatpush1.bf16.msra.mxu0 %v815
    %945 = vmatprep.subr.bf16.mxu0 %v818
    %946 = vmatpush1.bf16.msra.mxu0 %v817
    %947 = vmatprep.subr.bf16.mxu0 %v820
    %948 = vmatpush1.bf16.msra.mxu0 %v819
    %949 = vmatprep.subr.bf16.mxu0 %v822
    %950 = vmatpush1.bf16.msra.mxu0 %v821
    %951 = vmatprep.subr.bf16.mxu0 %v824
    %952 = vmatpush1.bf16.msra.mxu0 %v823
    %953 = vmatprep.subr.bf16.mxu0 %v826
    %954 = vmatpush1.bf16.msra.mxu0 %v825
    %955 = vmatprep.subr.bf16.mxu0 %v828
    %956 = vmatpush1.bf16.msra.mxu0 %v827
    %957 = vmatprep.subr.bf16.mxu0 %v830
    %958 = vmatpush1.bf16.msra.mxu0 %v829
    %959 = vmatprep.subr.bf16.mxu0 %v832
    %960 = vmatpush1.bf16.msra.mxu0 %v831
    %961 = vmatprep.mubr.bf16.mxu0 %v542
    %962 = vmatmul.mubr.bf16.gmra.mrb[0].mxu0 %v541
    %v963 = vpop.f32.mrb[0].mxu0
    %v964 = vadd.f32 0.0, %v963
    %v965 = vpop.f32.mrb[0].mxu0
    %v966 = vadd.f32 0.0, %v965
    %v967 = vpop.f32.mrb[0].mxu0
    %v968 = vpop.f32.mrb[0].mxu0
    %969 = vdwg.mxu0
    %970 = vmatprep.subr.bf16.mxu0 %v834
    %971 = vmatpush1.bf16.msra.mxu0 %v833
    %972 = vmatprep.subr.bf16.mxu0 %v836
    %973 = vmatpush1.bf16.msra.mxu0 %v835
    %974 = vmatprep.subr.bf16.mxu0 %v838
    %975 = vmatpush1.bf16.msra.mxu0 %v837
    %976 = vmatprep.subr.bf16.mxu0 %v840
    %977 = vmatpush1.bf16.msra.mxu0 %v839
    %978 = vmatprep.subr.bf16.mxu0 %v842
    %979 = vmatpush1.bf16.msra.mxu0 %v841
    %980 = vmatprep.subr.bf16.mxu0 %v844
    %981 = vmatpush1.bf16.msra.mxu0 %v843
    %982 = vmatprep.subr.bf16.mxu0 %v846
    %983 = vmatpush1.bf16.msra.mxu0 %v845
    %984 = vmatprep.subr.bf16.mxu0 %v848
    %985 = vmatpush1.bf16.msra.mxu0 %v847
    %986 = vmatprep.subr.bf16.mxu0 %v850
    %987 = vmatpush1.bf16.msra.mxu0 %v849
    %988 = vmatprep.subr.bf16.mxu0 %v852
    %989 = vmatpush1.bf16.msra.mxu0 %v851
    %990 = vmatprep.subr.bf16.mxu0 %v854
    %991 = vmatpush1.bf16.msra.mxu0 %v853
    %992 = vmatprep.subr.bf16.mxu0 %v856
    %993 = vmatpush1.bf16.msra.mxu0 %v855
    %994 = vmatprep.subr.bf16.mxu0 %v858
    %995 = vmatpush1.bf16.msra.mxu0 %v857
    %996 = vmatprep.subr.bf16.mxu0 %v860
    %997 = vmatpush1.bf16.msra.mxu0 %v859
    %998 = vmatprep.subr.bf16.mxu0 %v862
    %999 = vmatpush1.bf16.msra.mxu0 %v861
    %1000 = vmatprep.subr.bf16.mxu0 %v864
    %1001 = vmatpush1.bf16.msra.mxu0 %v863
    %1002 = vmatprep.mubr.bf16.mxu0 %v544
    %1003 = vmatmul.mubr.bf16.gmra.mrb[0].mxu0 %v543
    %v1004 = vpop.f32.mrb[0].mxu0
    %v1005 = vadd.f32 %v964, %v1004
    %v1006 = vpop.f32.mrb[0].mxu0
    %v1007 = vadd.f32 %v966, %v1006
    %v1008 = vpop.f32.mrb[0].mxu0
    %v1009 = vpop.f32.mrb[0].mxu0
    %1010 = vdwg.mxu0
    %v1011 = vxor.u32 %v1005, 2147483648
    %v1012 = vxor.u32 %v1007, 2147483648
    %v1013 = vmul.f32 %v1011, 1.442695
    %v1014 = vpow.pop %v1013
    %v1015 = vmul.f32 %v1012, 1.442695
    %v1016 = vpow.pop %v1015
    %v1017 = vadd.f32 %v1014, 1.0
    %v1018 = vadd.f32 %v1016, 1.0
    %v1019 = vrcp.pop %v1017
    %v1020 = vmul.f32 1.0, %v1019
    %v1021 = vrcp.pop %v1018
    %v1022 = vmul.f32 1.0, %v1021
    %v1025 = vcombine.low %v1020, %v1022
    %v1027 = vunpack.c.l.s4 1966171168
    %v1028 = vunpack.c.0.s8 %v1027
    %v1029 = vlaneseq
    %v1030 = vshrl.u32 %v1029, 7
    %v1031 = vsub.s32 %v1028, %v1030
    %v1032 = vrot.slane %v1025, %v1031
    %v1033 = vcombine.high %v1032, %v1032
    %v1035 = vunpack.c.l.s4 1966171168
    %v1036 = vunpack.c.0.s8 %v1035
    %v1037 = vlaneseq
    %v1038 = vshrl.u32 %v1037, 7
    %v1039 = vsub.s32 %v1036, %v1038
    %v1040 = vrot.slane %v1032, %v1039
    %v1042 = vunpack.c.l.s4 1966171168
    %v1043 = vunpack.c.0.s8 %v1042
    %v1044 = vlaneseq
    %v1045 = vshrl.u32 %v1044, 7
    %v1046 = vsub.s32 %v1043, %v1045
    %v1047 = vrot.slane %v1033, %v1046
    %v1048 = vlaneseq
    %v1049 = vshrl.u32 %v1048, 7
    %v1050 = vsub.s32 0, %v1049
    %v1051 = vrot.slane %v1040, %v1050
    %v1052 = vlaneseq
    %v1053 = vshrl.u32 %v1052, 7
    %v1054 = vsub.s32 1, %v1053
    %v1055 = vrot.slane %v1040, %v1054
    %v1056 = vlaneseq
    %v1057 = vshrl.u32 %v1056, 7
    %v1058 = vsub.s32 0, %v1057
    %v1059 = vrot.slane %v1047, %v1058
    %v1060 = vlaneseq
    %v1061 = vshrl.u32 %v1060, 7
    %v1062 = vsub.s32 1, %v1061
    %v1063 = vrot.slane %v1047, %v1062
    %v1068 = vmul.f32 %v432, %v1051
    %v1069 = vmul.f32 %v433, %v1055
    %v1070 = vmul.f32 %v434, %v1051
    %v1071 = vmul.f32 %v435, %v1055
    %v1072 = vmul.f32 %v436, %v1051
    %v1073 = vmul.f32 %v437, %v1055
    %v1074 = vmul.f32 %v438, %v1051
    %v1075 = vmul.f32 %v439, %v1055
    %v1076 = vmul.f32 %v440, %v1059
    %v1077 = vmul.f32 %v441, %v1063
    %v1078 = vmul.f32 %v442, %v1059
    %v1079 = vmul.f32 %v443, %v1063
    %v1080 = vmul.f32 %v444, %v1059
    %v1081 = vmul.f32 %v445, %v1063
    %v1082 = vmul.f32 %v446, %v1059
    %v1083 = vmul.f32 %v447, %v1063
    %1084 = vst [vmem:[#allocation7] sm:$0xff] %v1068
    %1085 = vst [vmem:[#allocation7 + $0x8] sm:$0xff] %v1069
    %1086 = vst [vmem:[#allocation7 + $0x10] sm:$0xff] %v1070
    %1087 = vst [vmem:[#allocation7 + $0x18] sm:$0xff] %v1071
    %1088 = vst [vmem:[#allocation7 + $0x20] sm:$0xff] %v1072
    %1089 = vst [vmem:[#allocation7 + $0x28] sm:$0xff] %v1073
    %1090 = vst [vmem:[#allocation7 + $0x30] sm:$0xff] %v1074
    %1091 = vst [vmem:[#allocation7 + $0x38] sm:$0xff] %v1075
    %1092 = vst [vmem:[#allocation7 + $0x40] sm:$0xff] %v1076
    %1093 = vst [vmem:[#allocation7 + $0x48] sm:$0xff] %v1077
    %1094 = vst [vmem:[#allocation7 + $0x50] sm:$0xff] %v1078
    %1095 = vst [vmem:[#allocation7 + $0x58] sm:$0xff] %v1079
    %1096 = vst [vmem:[#allocation7 + $0x60] sm:$0xff] %v1080
    %1097 = vst [vmem:[#allocation7 + $0x68] sm:$0xff] %v1081
    %1098 = vst [vmem:[#allocation7 + $0x70] sm:$0xff] %v1082
    %1099 = vst [vmem:[#allocation7 + $0x78] sm:$0xff] %v1083
    // Predicated region
    $region26: #{tpu_custom_call.1} parent=1 // pred_check
      _
    $region27: #{tpu_custom_call.1} parent=1 // pred_check_branch
      %1101 = sbr.rel (0) target = $region29
    $region28: #{tpu_custom_call.1} parent=1 // pred_region
      %s1103 = ssub.s32 2048, 2048
      %1104 = vsyncadd [#allocation4], %s1103
      %s1105 = sshll.u32 [#allocation7], 4
      %s1106 = int_to_ptr.vmem [resolvable:$true] %s1105
      %1111 = dma.vmem_to_hbm [thread:$0]  %s1106, 2048, %s4, [#allocation4], 256, 256, 16
    $region29: #{tpu_custom_call.1} parent=1 // pred_fallthru
      _
    // Predicated region
    $region30: #{tpu_custom_call.1} parent=1 // pred_check
      _
    $region31: #{tpu_custom_call.1} parent=1 // pred_check_branch
      %1113 = sbr.rel (0) target = $region33
    $region32: #{tpu_custom_call.1} parent=1 // pred_region
      %1114 = dma.done [#allocation4], 2048
    $region33: #{tpu_custom_call.1} parent=1 // pred_fallthru
      _
    %1115 = vsyncpa [#allocation3], 1
    %1116 = vsyncpa [#allocation6], 1
    %1117 = vsyncpa [#allocation4], 1

// kernel: tpu_custom_call.1
$region0: #{tpu_custom_call.1}
  #allocation0 [shape = 'u32[]', space=smem, size = 0x4, offset = 0x4, fixed_abs, tag = 'smem constant byte address 0x4 - core index']
  #allocation1 [shape = 'u32[144,128]{1,0:T(1,128)}', space=vmem, size = 0x12000, scoped, tag = 'internal scratch']
  %s0 = inlined_call_operand.hbm [shape: f32[2,32,256], index: 0, kind: input, shape index: {}]
  %s1 = inlined_call_operand.vmem [shape: f32[32,2], index: 1, kind: input, shape index: {}]
  %s2 = inlined_call_operand.vmem [shape: f32[2,32], index: 2, kind: input, shape index: {}]
  %s3 = inlined_call_operand.hbm [shape: bf16[512,256], index: 3, kind: input, shape index: {}]
  %s4 = inlined_call_operand.hbm [shape: f32[2,32,256], index: 4, kind: output, shape index: {}]
  %s5 = sld [smem:[#allocation0]]
  $region34: #{tpu_custom_call.1} parent=0
    _
  %s7 = ssub.s32 1, %s5
  %s8 = scalar_select 0, %s7, %s5
  $region1: #{tpu_custom_call.1} parent=0
    #allocation2 [shape = 'u8[65536]{0}', space=vmem, size = 0x10000, scoped, tag = 'input window, operand 0, single buffered']
    #allocation3 [shape = 's32[1]{0}', space=sflag, size = 0x4, scoped, tag = 'scoped memory for tpu_custom_call.1']
    #allocation4 [shape = 's32[1]{0}', space=sflag, size = 0x4, scoped, tag = 'scoped memory for tpu_custom_call.1']
    #allocation5 [shape = 'u8[262144]{0}', space=vmem, size = 0x40000, scoped, tag = 'input window, operand 3, single buffered']
    #allocation6 [shape = 's32[1]{0}', space=sflag, size = 0x4, scoped, tag = 'scoped memory for tpu_custom_call.1']
    #allocation7 [shape = 'u8[65536]{0}', space=vmem, size = 0x10000, scoped, tag = 'output window, operand 0, single buffered']
    %9 = vsyncpa [#allocation3], 0
    %10 = vsyncpa [#allocation6], 0
    %11 = vsyncpa [#allocation4], 0
    // Predicated region
    $region2: #{tpu_custom_call.1} parent=1 // pred_check
      _
    $region3: #{tpu_custom_call.1} parent=1 // pred_check_branch
      %13 = sbr.rel (0) target = $region5
    $region4: #{tpu_custom_call.1} parent=1 // pred_region
      %s15 = ssub.s32 2048, 2048
      %16 = vsyncadd [#allocation3], %s15
      %s17 = sshll.u32 [#allocation2], 4
      %s18 = int_to_ptr.vmem [resolvable:$true] %s17
      %23 = dma.hbm_to_vmem [thread:$0]  %s0, 2048, %s18, [#allocation3], 256, 256, 16
    $region5: #{tpu_custom_call.1} parent=1 // pred_fallthru
      _
    // Predicated region
    $region6: #{tpu_custom_call.1} parent=1 // pred_check
      _
    $region7: #{tpu_custom_call.1} parent=1 // pred_check_branch
      %25 = sbr.rel (0) target = $region9
    $region8: #{tpu_custom_call.1} parent=1 // pred_region
      _
    $region9: #{tpu_custom_call.1} parent=1 // pred_fallthru
      _
    // Predicated region
    $region10: #{tpu_custom_call.1} parent=1 // pred_check
      _
    $region11: #{tpu_custom_call.1} parent=1 // pred_check_branch
      %27 = sbr.rel (0) target = $region13
    $region12: #{tpu_custom_call.1} parent=1 // pred_region
      _
    $region13: #{tpu_custom_call.1} parent=1 // pred_fallthru
      _
    // Predicated region
    $region14: #{tpu_custom_call.1} parent=1 // pred_check
      _
    $region15: #{tpu_custom_call.1} parent=1 // pred_check_branch
      %29 = sbr.rel (0) target = $region17
    $region16: #{tpu_custom_call.1} parent=1 // pred_region
      %s31 = ssub.s32 8192, 8192
      %32 = vsyncadd [#allocation6], %s31
      %s33 = sshll.u32 [#allocation5], 4
      %s34 = int_to_ptr.vmem [resolvable:$true] %s33
      %39 = dma.hbm_to_vmem [thread:$0]  %s3, 8192, %s34, [#allocation6], 128, 128, 8
    $region17: #{tpu_custom_call.1} parent=1 // pred_fallthru
      _
    // Predicated region
    $region18: #{tpu_custom_call.1} parent=1 // pred_check
      _
    $region19: #{tpu_custom_call.1} parent=1 // pred_check_branch
      %41 = sbr.rel (0) target = $region21
    $region20: #{tpu_custom_call.1} parent=1 // pred_region
      %42 = dma.done [#allocation3], 2048
    $region21: #{tpu_custom_call.1} parent=1 // pred_fallthru
      _
    // Predicated region
    $region22: #{tpu_custom_call.1} parent=1 // pred_check
      _
    $region23: #{tpu_custom_call.1} parent=1 // pred_check_branch
      %44 = sbr.rel (0) target = $region25
    $region24: #{tpu_custom_call.1} parent=1 // pred_region
      %45 = dma.done [#allocation6], 8192
    $region25: #{tpu_custom_call.1} parent=1 // pred_fallthru
      _
    %v46 = vld [vmem:[#allocation2] sm:$0xff]
    %v47 = vld [vmem:[#allocation2 + $0x8] sm:$0xff]
    %v48 = vld [vmem:[#allocation2 + $0x10] sm:$0xff]
    %v49 = vld [vmem:[#allocation2 + $0x18] sm:$0xff]
    %v50 = vld [vmem:[#allocation2 + $0x20] sm:$0xff]
    %v51 = vld [vmem:[#allocation2 + $0x28] sm:$0xff]
    %v52 = vld [vmem:[#allocation2 + $0x30] sm:$0xff]
    %v53 = vld [vmem:[#allocation2 + $0x38] sm:$0xff]
    %v54 = vld [vmem:[#allocation2 + $0x40] sm:$0xff]
    %v55 = vld [vmem:[#allocation2 + $0x48] sm:$0xff]
    %v56 = vld [vmem:[#allocation2 + $0x50] sm:$0xff]
    %v57 = vld [vmem:[#allocation2 + $0x58] sm:$0xff]
    %v58 = vld [vmem:[#allocation2 + $0x60] sm:$0xff]
    %v59 = vld [vmem:[#allocation2 + $0x68] sm:$0xff]
    %v60 = vld [vmem:[#allocation2 + $0x70] sm:$0xff]
    %v61 = vld [vmem:[#allocation2 + $0x78] sm:$0xff]
    %v62 = vadd.f32 %v46, %v47
    %63 = vadd.xlane.f32.xlu0 %v62
    %v64 = vpop.xlane.xlu0 %63
    %v65 = vadd.f32 %v48, %v49
    %66 = vadd.xlane.f32.xlu0 %v65
    %v67 = vpop.xlane.xlu0 %66
    %v68 = vadd.f32 %v50, %v51
    %69 = vadd.xlane.f32.xlu0 %v68
    %v70 = vpop.xlane.xlu0 %69
    %v71 = vadd.f32 %v52, %v53
    %72 = vadd.xlane.f32.xlu0 %v71
    %v73 = vpop.xlane.xlu0 %72
    %v74 = vadd.f32 %v54, %v55
    %75 = vadd.xlane.f32.xlu0 %v74
    %v76 = vpop.xlane.xlu0 %75
    %v77 = vadd.f32 %v56, %v57
    %78 = vadd.xlane.f32.xlu0 %v77
    %v79 = vpop.xlane.xlu0 %78
    %v80 = vadd.f32 %v58, %v59
    %81 = vadd.xlane.f32.xlu0 %v80
    %v82 = vpop.xlane.xlu0 %81
    %v83 = vadd.f32 %v60, %v61
    %84 = vadd.xlane.f32.xlu0 %v83
    %v85 = vpop.xlane.xlu0 %84
    %v86 = vrcp.pop 256.0
    %v87 = vmul.f32 %v64, %v86
    %v88 = vmul.f32 %v67, %v86
    %v89 = vmul.f32 %v70, %v86
    %v90 = vmul.f32 %v73, %v86
    %v91 = vmul.f32 %v76, %v86
    %v92 = vmul.f32 %v79, %v86
    %v93 = vmul.f32 %v82, %v86
    %v94 = vmul.f32 %v85, %v86
    %v95 = vmax.f32 %v46, %v47
    %96 = vmax.xlane.f32.xlu0 %v95
    %v97 = vpop.xlane.xlu0 %96
    %v98 = vmax.f32 %v48, %v49
    %99 = vmax.xlane.f32.xlu0 %v98
    %v100 = vpop.xlane.xlu0 %99
    %v101 = vmax.f32 %v50, %v51
    %102 = vmax.xlane.f32.xlu0 %v101
    %v103 = vpop.xlane.xlu0 %102
    %v104 = vmax.f32 %v52, %v53
    %105 = vmax.xlane.f32.xlu0 %v104
    %v106 = vpop.xlane.xlu0 %105
    %v107 = vmax.f32 %v54, %v55
    %108 = vmax.xlane.f32.xlu0 %v107
    %v109 = vpop.xlane.xlu0 %108
    %v110 = vmax.f32 %v56, %v57
    %111 = vmax.xlane.f32.xlu0 %v110
    %v112 = vpop.xlane.xlu0 %111
    %v113 = vmax.f32 %v58, %v59
    %114 = vmax.xlane.f32.xlu0 %v113
    %v115 = vpop.xlane.xlu0 %114
    %v116 = vmax.f32 %v60, %v61
    %117 = vmax.xlane.f32.xlu0 %v116
    %v118 = vpop.xlane.xlu0 %117
    %v127 = vlaneseq
    %v128 = vand.u32 %v127, 127
    %v129 = vlaneseq
    %v130 = vshrl.u32 %v129, 7
    %v131 = vsub.s32 %v128, %v130
    %v132 = vrot.slane %v87, %v131
    %v133 = vadd.s32 %v128, 4294967288
    %v134 = vlaneseq
    %v135 = vshrl.u32 %v134, 7
    %v136 = vsub.s32 %v133, %v135
    %v137 = vrot.slane %v88, %v136
    %vm138 = vcmask 130112
    %v139 = vsel %vm138, %v137, %v132
    %v140 = vadd.s32 %v128, 4294967280
    %v141 = vlaneseq
    %v142 = vshrl.u32 %v141, 7
    %v143 = vsub.s32 %v140, %v142
    %v144 = vrot.slane %v89, %v143
    %vm145 = vcmask 195712
    %v146 = vsel %vm145, %v144, %v139
    %v147 = vadd.s32 %v128, 4294967272
    %v148 = vlaneseq
    %v149 = vshrl.u32 %v148, 7
    %v150 = vsub.s32 %v147, %v149
    %v151 = vrot.slane %v90, %v150
    %vm152 = vcmask 261312
    %v153 = vsel %vm152, %v151, %v146
    %v154 = vlaneseq
    %v155 = vshrl.u32 %v154, 7
    %v156 = vsub.s32 %v128, %v155
    %v157 = vrot.slane %v91, %v156
    %v158 = vlaneseq
    %v159 = vshrl.u32 %v158, 7
    %v160 = vsub.s32 %v133, %v159
    %v161 = vrot.slane %v92, %v160
    %v162 = vsel %vm138, %v161, %v157
    %v163 = vlaneseq
    %v164 = vshrl.u32 %v163, 7
    %v165 = vsub.s32 %v140, %v164
    %v166 = vrot.slane %v93, %v165
    %v167 = vsel %vm145, %v166, %v162
    %v168 = vlaneseq
    %v169 = vshrl.u32 %v168, 7
    %v170 = vsub.s32 %v147, %v169
    %v171 = vrot.slane %v94, %v170
    %v172 = vsel %vm152, %v171, %v167
    %vm173 = vcmask 1041409
    %v174 = vsel %vm173, %v172, %v153
    %v184 = vlaneseq
    %v185 = vshrl.u32 %v184, 7
    %v186 = vsub.s32 %v128, %v185
    %v187 = vrot.slane %v97, %v186
    %v188 = vlaneseq
    %v189 = vshrl.u32 %v188, 7
    %v190 = vsub.s32 %v133, %v189
    %v191 = vrot.slane %v100, %v190
    %v192 = vsel %vm138, %v191, %v187
    %v193 = vlaneseq
    %v194 = vshrl.u32 %v193, 7
    %v195 = vsub.s32 %v140, %v194
    %v196 = vrot.slane %v103, %v195
    %v197 = vsel %vm145, %v196, %v192
    %v198 = vlaneseq
    %v199 = vshrl.u32 %v198, 7
    %v200 = vsub.s32 %v147, %v199
    %v201 = vrot.slane %v106, %v200
    %v202 = vsel %vm152, %v201, %v197
    %v203 = vlaneseq
    %v204 = vshrl.u32 %v203, 7
    %v205 = vsub.s32 %v128, %v204
    %v206 = vrot.slane %v109, %v205
    %v207 = vlaneseq
    %v208 = vshrl.u32 %v207, 7
    %v209 = vsub.s32 %v133, %v208
    %v210 = vrot.slane %v112, %v209
    %v211 = vsel %vm138, %v210, %v206
    %v212 = vlaneseq
    %v213 = vshrl.u32 %v212, 7
    %v214 = vsub.s32 %v140, %v213
    %v215 = vrot.slane %v115, %v214
    %v216 = vsel %vm145, %v215, %v211
    %v217 = vlaneseq
    %v218 = vshrl.u32 %v217, 7
    %v219 = vsub.s32 %v147, %v218
    %v220 = vrot.slane %v118, %v219
    %v221 = vsel %vm152, %v220, %v216
    %vm222 = vcmask 1043459
    %v223 = vsel %vm222, %v221, %v202
    %vm225 = vcmask 1041408
    %v226 = vsel %vm225, %v174, %v223
    %v227 = vld [vmem:[%s1] sm:$0xff]
    %v228 = vld [vmem:[%s1 + $0x8] sm:$0xff]
    %v229 = vld [vmem:[%s1 + $0x10] sm:$0xff]
    %v230 = vld [vmem:[%s1 + $0x18] sm:$0xff]
    %vm231 = vcmask 261120
    %v233 = vsel %vm231, %v226, 0
    %235 = vmatprep.subr.mxu0 0.0
    %236 = vmatpush1.msra.mxu0 %v227
    %237 = vmatprep.subr.mxu0 0.0
    %238 = vmatpush1.msra.mxu0 %v228
    %239 = vmatprep.subr.mxu0 0.0
    %240 = vmatpush1.msra.mxu0 %v229
    %241 = vmatprep.subr.mxu0 0.0
    %242 = vmatpush1.msra.mxu0 %v230
    %243 = vmatprep.subr.mxu0 0.0
    %244 = vmatpush1.msra.mxu0 0.0
    %245 = vmatprep.subr.mxu0 0.0
    %246 = vmatpush1.msra.mxu0 0.0
    %247 = vmatprep.subr.mxu0 0.0
    %248 = vmatpush1.msra.mxu0 0.0
    %249 = vmatprep.subr.mxu0 0.0
    %250 = vmatpush1.msra.mxu0 0.0
    %251 = vmatprep.subr.mxu0 0.0
    %252 = vmatpush1.msra.mxu0 0.0
    %253 = vmatprep.subr.mxu0 0.0
    %254 = vmatpush1.msra.mxu0 0.0
    %255 = vmatprep.subr.mxu0 0.0
    %256 = vmatpush1.msra.mxu0 0.0
    %257 = vmatprep.subr.mxu0 0.0
    %258 = vmatpush1.msra.mxu0 0.0
    %259 = vmatprep.subr.mxu0 0.0
    %260 = vmatpush1.msra.mxu0 0.0
    %261 = vmatprep.subr.mxu0 0.0
    %262 = vmatpush1.msra.mxu0 0.0
    %263 = vmatprep.subr.mxu0 0.0
    %264 = vmatpush1.msra.mxu0 0.0
    %265 = vmatprep.subr.mxu0 0.0
    %266 = vmatpush1.msra.mxu0 0.0
    %267 = vmatprep.subr.mxu0 0.0
    %268 = vmatpush1.msra.mxu0 0.0
    %269 = vmatprep.subr.mxu0 0.0
    %270 = vmatpush1.msra.mxu0 0.0
    %271 = vmatprep.subr.mxu0 0.0
    %272 = vmatpush1.msra.mxu0 0.0
    %273 = vmatprep.subr.mxu0 0.0
    %274 = vmatpush1.msra.mxu0 0.0
    %275 = vmatprep.subr.mxu0 0.0
    %276 = vmatpush1.msra.mxu0 0.0
    %277 = vmatprep.subr.mxu0 0.0
    %278 = vmatpush1.msra.mxu0 0.0
    %279 = vmatprep.subr.mxu0 0.0
    %280 = vmatpush1.msra.mxu0 0.0
    %281 = vmatprep.subr.mxu0 0.0
    %282 = vmatpush1.msra.mxu0 0.0
    %283 = vmatprep.subr.mxu0 0.0
    %284 = vmatpush1.msra.mxu0 0.0
    %285 = vmatprep.subr.mxu0 0.0
    %286 = vmatpush1.msra.mxu0 0.0
    %287 = vmatprep.subr.mxu0 0.0
    %288 = vmatpush1.msra.mxu0 0.0
    %289 = vmatprep.subr.mxu0 0.0
    %290 = vmatpush1.msra.mxu0 0.0
    %291 = vmatprep.subr.mxu0 0.0
    %292 = vmatpush1.msra.mxu0 0.0
    %293 = vmatprep.subr.mxu0 0.0
    %294 = vmatpush1.msra.mxu0 0.0
    %295 = vmatprep.subr.mxu0 0.0
    %296 = vmatpush1.msra.mxu0 0.0
    %297 = vmatprep.subr.mxu0 0.0
    %298 = vmatpush1.msra.mxu0 0.0
    %299 = vmatprep.mubr.f32.mxu0 0.0
    %300 = vmatmul.mubr.f32.gmra.mrb[0].mxu0 %v233
    %v301 = vpop.f32.mrb[0].mxu0
    %v302 = vadd.f32 0.0, %v301
    %v303 = vpop.f32.mrb[0].mxu0
    %304 = vdwg.mxu0
    %v305 = vmax.f32 %v302, 0.0
    %v306 = vld [vmem:[%s2] sm:$0x3]
    %vm307 = vcmask 15360
    %v309 = vsel %vm307, %v305, 0
    %v312 = vsel %vm225, %v306, 0
    %314 = vmatprep.subr.mxu0 0.0
    %315 = vmatpush1.msra.mxu0 %v312
    %316 = vmatprep.subr.mxu0 0.0
    %317 = vmatpush1.msra.mxu0 0.0
    %318 = vmatprep.subr.mxu0 0.0
    %319 = vmatpush1.msra.mxu0 0.0
    %320 = vmatprep.subr.mxu0 0.0
    %321 = vmatpush1.msra.mxu0 0.0
    %322 = vmatprep.subr.mxu0 0.0
    %323 = vmatpush1.msra.mxu0 0.0
    %324 = vmatprep.subr.mxu0 0.0
    %325 = vmatpush1.msra.mxu0 0.0
    %326 = vmatprep.subr.mxu0 0.0
    %327 = vmatpush1.msra.mxu0 0.0
    %328 = vmatprep.subr.mxu0 0.0
    %329 = vmatpush1.msra.mxu0 0.0
    %330 = vmatprep.subr.mxu0 0.0
    %331 = vmatpush1.msra.mxu0 0.0
    %332 = vmatprep.subr.mxu0 0.0
    %333 = vmatpush1.msra.mxu0 0.0
    %334 = vmatprep.subr.mxu0 0.0
    %335 = vmatpush1.msra.mxu0 0.0
    %336 = vmatprep.subr.mxu0 0.0
    %337 = vmatpush1.msra.mxu0 0.0
    %338 = vmatprep.subr.mxu0 0.0
    %339 = vmatpush1.msra.mxu0 0.0
    %340 = vmatprep.subr.mxu0 0.0
    %341 = vmatpush1.msra.mxu0 0.0
    %342 = vmatprep.subr.mxu0 0.0
    %343 = vmatpush1.msra.mxu0 0.0
    %344 = vmatprep.subr.mxu0 0.0
    %345 = vmatpush1.msra.mxu0 0.0
    %346 = vmatprep.subr.mxu0 0.0
    %347 = vmatpush1.msra.mxu0 0.0
    %348 = vmatprep.subr.mxu0 0.0
    %349 = vmatpush1.msra.mxu0 0.0
    %350 = vmatprep.subr.mxu0 0.0
    %351 = vmatpush1.msra.mxu0 0.0
    %352 = vmatprep.subr.mxu0 0.0
    %353 = vmatpush1.msra.mxu0 0.0
    %354 = vmatprep.subr.mxu0 0.0
    %355 = vmatpush1.msra.mxu0 0.0
    %356 = vmatprep.subr.mxu0 0.0
    %357 = vmatpush1.msra.mxu0 0.0
    %358 = vmatprep.subr.mxu0 0.0
    %359 = vmatpush1.msra.mxu0 0.0
    %360 = vmatprep.subr.mxu0 0.0
    %361 = vmatpush1.msra.mxu0 0.0
    %362 = vmatprep.subr.mxu0 0.0
    %363 = vmatpush1.msra.mxu0 0.0
    %364 = vmatprep.subr.mxu0 0.0
    %365 = vmatpush1.msra.mxu0 0.0
    %366 = vmatprep.subr.mxu0 0.0
    %367 = vmatpush1.msra.mxu0 0.0
    %368 = vmatprep.subr.mxu0 0.0
    %369 = vmatpush1.msra.mxu0 0.0
    %370 = vmatprep.subr.mxu0 0.0
    %371 = vmatpush1.msra.mxu0 0.0
    %372 = vmatprep.subr.mxu0 0.0
    %373 = vmatpush1.msra.mxu0 0.0
    %374 = vmatprep.subr.mxu0 0.0
    %375 = vmatpush1.msra.mxu0 0.0
    %376 = vmatprep.subr.mxu0 0.0
    %377 = vmatpush1.msra.mxu0 0.0
    %378 = vmatprep.mubr.f32.mxu0 0.0
    %379 = vmatmul.mubr.f32.gmra.mrb[0].mxu0 %v309
    %v380 = vpop.f32.mrb[0].mxu0
    %v381 = vadd.f32 0.0, %v380
    %v382 = vpop.f32.mrb[0].mxu0
    %383 = vdwg.mxu0
    %v385 = vrot.slane %v381, 2
    %v387 = vadd.f32 %v381, %v385
    %v388 = vxor.u32 %v387, 2147483648
    %v389 = vmul.f32 %v388, 1.442695
    %v390 = vpow.pop %v389
    %v391 = vadd.f32 %v390, 1.0
    %v392 = vrcp.pop %v391
    %v393 = vmul.f32 1.0, %v392
    %v394 = vlaneseq
    %v395 = vshrl.u32 %v394, 7
    %v396 = vsub.s32 0, %v395
    %v397 = vrot.slane %v393, %v396
    %399 = vbcast.lane.b32.xlu0 %v397, 256
    %v400 = vpop.permute.xlu0 %399
    %s402 = sor.u32 256, 8
    %403 = vbcast.lane.b32.xlu0 %v397, %s402
    %v404 = vpop.permute.xlu0 %403
    %s406 = sor.u32 256, 16
    %407 = vbcast.lane.b32.xlu0 %v397, %s406
    %v408 = vpop.permute.xlu0 %407
    %s410 = sor.u32 256, 24
    %411 = vbcast.lane.b32.xlu0 %v397, %s410
    %v412 = vpop.permute.xlu0 %411
    %v413 = vlaneseq
    %v414 = vshrl.u32 %v413, 7
    %v415 = vsub.s32 1, %v414
    %v416 = vrot.slane %v393, %v415
    %418 = vbcast.lane.b32.xlu0 %v416, 256
    %v419 = vpop.permute.xlu0 %418
    %s421 = sor.u32 256, 8
    %422 = vbcast.lane.b32.xlu0 %v416, %s421
    %v423 = vpop.permute.xlu0 %422
    %s425 = sor.u32 256, 16
    %426 = vbcast.lane.b32.xlu0 %v416, %s425
    %v427 = vpop.permute.xlu0 %426
    %s429 = sor.u32 256, 24
    %430 = vbcast.lane.b32.xlu0 %v416, %s429
    %v431 = vpop.permute.xlu0 %430
    %v432 = vmul.f32 %v46, %v400
    %v433 = vmul.f32 %v47, %v400
    %v434 = vmul.f32 %v48, %v404
    %v435 = vmul.f32 %v49, %v404
    %v436 = vmul.f32 %v50, %v408
    %v437 = vmul.f32 %v51, %v408
    %v438 = vmul.f32 %v52, %v412
    %v439 = vmul.f32 %v53, %v412
    %v440 = vmul.f32 %v54, %v419
    %v441 = vmul.f32 %v55, %v419
    %v442 = vmul.f32 %v56, %v423
    %v443 = vmul.f32 %v57, %v423
    %v444 = vmul.f32 %v58, %v427
    %v445 = vmul.f32 %v59, %v427
    %v446 = vmul.f32 %v60, %v431
    %v447 = vmul.f32 %v61, %v431
    %v448 = vadd.f32 %v432, %v434
    %v449 = vadd.f32 %v448, %v436
    %v450 = vadd.f32 %v449, %v438
    %v451 = vrot.slane %v450, 4
    %v452 = vadd.f32 %v450, %v451
    %v453 = vrot.slane %v452, 2
    %v454 = vadd.f32 %v452, %v453
    %v455 = vrot.slane %v454, 1
    %v456 = vadd.f32 %v454, %v455
    %v457 = vadd.f32 %v433, %v435
    %v458 = vadd.f32 %v457, %v437
    %v459 = vadd.f32 %v458, %v439
    %v460 = vrot.slane %v459, 4
    %v461 = vadd.f32 %v459, %v460
    %v462 = vrot.slane %v461, 2
    %v463 = vadd.f32 %v461, %v462
    %v464 = vrot.slane %v463, 1
    %v465 = vadd.f32 %v463, %v464
    %v466 = vadd.f32 %v440, %v442
    %v467 = vadd.f32 %v466, %v444
    %v468 = vadd.f32 %v467, %v446
    %v469 = vrot.slane %v468, 4
    %v470 = vadd.f32 %v468, %v469
    %v471 = vrot.slane %v470, 2
    %v472 = vadd.f32 %v470, %v471
    %v473 = vrot.slane %v472, 1
    %v474 = vadd.f32 %v472, %v473
    %v475 = vadd.f32 %v441, %v443
    %v476 = vadd.f32 %v475, %v445
    %v477 = vadd.f32 %v476, %v447
    %v478 = vrot.slane %v477, 4
    %v479 = vadd.f32 %v477, %v478
    %v480 = vrot.slane %v479, 2
    %v481 = vadd.f32 %v479, %v480
    %v482 = vrot.slane %v481, 1
    %v483 = vadd.f32 %v481, %v482
    %v484 = vrcp.pop 32.0
    %v485 = vmul.f32 %v456, %v484
    %v486 = vmul.f32 %v465, %v484
    %v487 = vmul.f32 %v474, %v484
    %v488 = vmul.f32 %v483, %v484
    %v489 = vmax.f32 %v432, %v434
    %v490 = vmax.f32 %v489, %v436
    %v491 = vmax.f32 %v490, %v438
    %v492 = vrot.slane %v491, 4
    %v493 = vmax.f32 %v491, %v492
    %v494 = vrot.slane %v493, 2
    %v495 = vmax.f32 %v493, %v494
    %v496 = vrot.slane %v495, 1
    %v497 = vmax.f32 %v495, %v496
    %v498 = vmax.f32 %v433, %v435
    %v499 = vmax.f32 %v498, %v437
    %v500 = vmax.f32 %v499, %v439
    %v501 = vrot.slane %v500, 4
    %v502 = vmax.f32 %v500, %v501
    %v503 = vrot.slane %v502, 2
    %v504 = vmax.f32 %v502, %v503
    %v505 = vrot.slane %v504, 1
    %v506 = vmax.f32 %v504, %v505
    %v507 = vmax.f32 %v440, %v442
    %v508 = vmax.f32 %v507, %v444
    %v509 = vmax.f32 %v508, %v446
    %v510 = vrot.slane %v509, 4
    %v511 = vmax.f32 %v509, %v510
    %v512 = vrot.slane %v511, 2
    %v513 = vmax.f32 %v511, %v512
    %v514 = vrot.slane %v513, 1
    %v515 = vmax.f32 %v513, %v514
    %v516 = vmax.f32 %v441, %v443
    %v517 = vmax.f32 %v516, %v445
    %v518 = vmax.f32 %v517, %v447
    %v519 = vrot.slane %v518, 4
    %v520 = vmax.f32 %v518, %v519
    %v521 = vrot.slane %v520, 2
    %v522 = vmax.f32 %v520, %v521
    %v523 = vrot.slane %v522, 1
    %v524 = vmax.f32 %v522, %v523
    %v529 = vsel %vm173, %v487, %v485
    %v530 = vsel %vm173, %v488, %v486
    %v537 = vsel %vm173, %v515, %v497
    %v538 = vsel %vm173, %v524, %v506
    %v541 = vpack.c.bf16 %v529, %v529
    %v542 = vpack.c.bf16 %v530, %v530
    %v543 = vpack.c.bf16 %v537, %v537
    %v544 = vpack.c.bf16 %v538, %v538
    %v545 = vld [vmem:[#allocation5] sm:$0xff]
    %v546 = vld [vmem:[#allocation5 + $0x8] sm:$0xff]
    %v547 = vld [vmem:[#allocation5 + $0x10] sm:$0xff]
    %v548 = vld [vmem:[#allocation5 + $0x18] sm:$0xff]
    %v549 = vld [vmem:[#allocation5 + $0x20] sm:$0xff]
    %v550 = vld [vmem:[#allocation5 + $0x28] sm:$0xff]
    %v551 = vld [vmem:[#allocation5 + $0x30] sm:$0xff]
    %v552 = vld [vmem:[#allocation5 + $0x38] sm:$0xff]
    %v553 = vld [vmem:[#allocation5 + $0x40] sm:$0xff]
    %v554 = vld [vmem:[#allocation5 + $0x48] sm:$0xff]
    %v555 = vld [vmem:[#allocation5 + $0x50] sm:$0xff]
    %v556 = vld [vmem:[#allocation5 + $0x58] sm:$0xff]
    %v557 = vld [vmem:[#allocation5 + $0x60] sm:$0xff]
    %v558 = vld [vmem:[#allocation5 + $0x68] sm:$0xff]
    %v559 = vld [vmem:[#allocation5 + $0x70] sm:$0xff]
    %v560 = vld [vmem:[#allocation5 + $0x78] sm:$0xff]
    %v561 = vld [vmem:[#allocation5 + $0x80] sm:$0xff]
    %v562 = vld [vmem:[#allocation5 + $0x88] sm:$0xff]
    %v563 = vld [vmem:[#allocation5 + $0x90] sm:$0xff]
    %v564 = vld [vmem:[#allocation5 + $0x98] sm:$0xff]
    %v565 = vld [vmem:[#allocation5 + $0xa0] sm:$0xff]
    %v566 = vld [vmem:[#allocation5 + $0xa8] sm:$0xff]
    %v567 = vld [vmem:[#allocation5 + $0xb0] sm:$0xff]
    %v568 = vld [vmem:[#allocation5 + $0xb8] sm:$0xff]
    %v569 = vld [vmem:[#allocation5 + $0xc0] sm:$0xff]
    %v570 = vld [vmem:[#allocation5 + $0xc8] sm:$0xff]
    %v571 = vld [vmem:[#allocation5 + $0xd0] sm:$0xff]
    %v572 = vld [vmem:[#allocation5 + $0xd8] sm:$0xff]
    %v573 = vld [vmem:[#allocation5 + $0xe0] sm:$0xff]
    %v574 = vld [vmem:[#allocation5 + $0xe8] sm:$0xff]
    %v575 = vld [vmem:[#allocation5 + $0xf0] sm:$0xff]
    %v576 = vld [vmem:[#allocation5 + $0xf8] sm:$0xff]
    %v577 = vld [vmem:[#allocation5 + $0x100] sm:$0xff]
    %v578 = vld [vmem:[#allocation5 + $0x108] sm:$0xff]
    %v579 = vld [vmem:[#allocation5 + $0x110] sm:$0xff]
    %v580 = vld [vmem:[#allocation5 + $0x118] sm:$0xff]
    %v581 = vld [vmem:[#allocation5 + $0x120] sm:$0xff]
    %v582 = vld [vmem:[#allocation5 + $0x128] sm:$0xff]
    %v583 = vld [vmem:[#allocation5 + $0x130] sm:$0xff]
    %v584 = vld [vmem:[#allocation5 + $0x138] sm:$0xff]
    %v585 = vld [vmem:[#allocation5 + $0x140] sm:$0xff]
    %v586 = vld [vmem:[#allocation5 + $0x148] sm:$0xff]
    %v587 = vld [vmem:[#allocation5 + $0x150] sm:$0xff]
    %v588 = vld [vmem:[#allocation5 + $0x158] sm:$0xff]
    %v589 = vld [vmem:[#allocation5 + $0x160] sm:$0xff]
    %v590 = vld [vmem:[#allocation5 + $0x168] sm:$0xff]
    %v591 = vld [vmem:[#allocation5 + $0x170] sm:$0xff]
    %v592 = vld [vmem:[#allocation5 + $0x178] sm:$0xff]
    %v593 = vld [vmem:[#allocation5 + $0x180] sm:$0xff]
    %v594 = vld [vmem:[#allocation5 + $0x188] sm:$0xff]
    %v595 = vld [vmem:[#allocation5 + $0x190] sm:$0xff]
    %v596 = vld [vmem:[#allocation5 + $0x198] sm:$0xff]
    %v597 = vld [vmem:[#allocation5 + $0x1a0] sm:$0xff]
    %v598 = vld [vmem:[#allocation5 + $0x1a8] sm:$0xff]
    %v599 = vld [vmem:[#allocation5 + $0x1b0] sm:$0xff]
    %v600 = vld [vmem:[#allocation5 + $0x1b8] sm:$0xff]
    %v601 = vld [vmem:[#allocation5 + $0x1c0] sm:$0xff]
    %v602 = vld [vmem:[#allocation5 + $0x1c8] sm:$0xff]
    %v603 = vld [vmem:[#allocation5 + $0x1d0] sm:$0xff]
    %v604 = vld [vmem:[#allocation5 + $0x1d8] sm:$0xff]
    %v605 = vld [vmem:[#allocation5 + $0x1e0] sm:$0xff]
    %v606 = vld [vmem:[#allocation5 + $0x1e8] sm:$0xff]
    %v607 = vld [vmem:[#allocation5 + $0x1f0] sm:$0xff]
    %v608 = vld [vmem:[#allocation5 + $0x1f8] sm:$0xff]
    %v673 = vunpack.c.l.b16 %v545
    %v674 = vunpack.c.h.b16 %v545
    %v675 = vunpack.c.l.b16 %v546
    %v676 = vunpack.c.h.b16 %v546
    %v677 = vunpack.c.l.b16 %v547
    %v678 = vunpack.c.h.b16 %v547
    %v679 = vunpack.c.l.b16 %v548
    %v680 = vunpack.c.h.b16 %v548
    %v681 = vunpack.c.l.b16 %v549
    %v682 = vunpack.c.h.b16 %v549
    %v683 = vunpack.c.l.b16 %v550
    %v684 = vunpack.c.h.b16 %v550
    %v685 = vunpack.c.l.b16 %v551
    %v686 = vunpack.c.h.b16 %v551
    %v687 = vunpack.c.l.b16 %v552
    %v688 = vunpack.c.h.b16 %v552
    %v689 = vunpack.c.l.b16 %v553
    %v690 = vunpack.c.h.b16 %v553
    %v691 = vunpack.c.l.b16 %v554
    %v692 = vunpack.c.h.b16 %v554
    %v693 = vunpack.c.l.b16 %v555
    %v694 = vunpack.c.h.b16 %v555
    %v695 = vunpack.c.l.b16 %v556
    %v696 = vunpack.c.h.b16 %v556
    %v697 = vunpack.c.l.b16 %v557
    %v698 = vunpack.c.h.b16 %v557
    %v699 = vunpack.c.l.b16 %v558
    %v700 = vunpack.c.h.b16 %v558
    %v701 = vunpack.c.l.b16 %v559
    %v702 = vunpack.c.h.b16 %v559
    %v703 = vunpack.c.l.b16 %v560
    %v704 = vunpack.c.h.b16 %v560
    %v705 = vunpack.c.l.b16 %v561
    %v706 = vunpack.c.h.b16 %v561
    %v707 = vunpack.c.l.b16 %v562
    %v708 = vunpack.c.h.b16 %v562
    %v709 = vunpack.c.l.b16 %v563
    %v710 = vunpack.c.h.b16 %v563
    %v711 = vunpack.c.l.b16 %v564
    %v712 = vunpack.c.h.b16 %v564
    %v713 = vunpack.c.l.b16 %v565
    %v714 = vunpack.c.h.b16 %v565
    %v715 = vunpack.c.l.b16 %v566
    %v716 = vunpack.c.h.b16 %v566
    %v717 = vunpack.c.l.b16 %v567
    %v718 = vunpack.c.h.b16 %v567
    %v719 = vunpack.c.l.b16 %v568
    %v720 = vunpack.c.h.b16 %v568
    %v721 = vunpack.c.l.b16 %v569
    %v722 = vunpack.c.h.b16 %v569
    %v723 = vunpack.c.l.b16 %v570
    %v724 = vunpack.c.h.b16 %v570
    %v725 = vunpack.c.l.b16 %v571
    %v726 = vunpack.c.h.b16 %v571
    %v727 = vunpack.c.l.b16 %v572
    %v728 = vunpack.c.h.b16 %v572
    %v729 = vunpack.c.l.b16 %v573
    %v730 = vunpack.c.h.b16 %v573
    %v731 = vunpack.c.l.b16 %v574
    %v732 = vunpack.c.h.b16 %v574
    %v733 = vunpack.c.l.b16 %v575
    %v734 = vunpack.c.h.b16 %v575
    %v735 = vunpack.c.l.b16 %v576
    %v736 = vunpack.c.h.b16 %v576
    %v737 = vunpack.c.l.b16 %v577
    %v738 = vunpack.c.h.b16 %v577
    %v739 = vunpack.c.l.b16 %v578
    %v740 = vunpack.c.h.b16 %v578
    %v741 = vunpack.c.l.b16 %v579
    %v742 = vunpack.c.h.b16 %v579
    %v743 = vunpack.c.l.b16 %v580
    %v744 = vunpack.c.h.b16 %v580
    %v745 = vunpack.c.l.b16 %v581
    %v746 = vunpack.c.h.b16 %v581
    %v747 = vunpack.c.l.b16 %v582
    %v748 = vunpack.c.h.b16 %v582
    %v749 = vunpack.c.l.b16 %v583
    %v750 = vunpack.c.h.b16 %v583
    %v751 = vunpack.c.l.b16 %v584
    %v752 = vunpack.c.h.b16 %v584
    %v753 = vunpack.c.l.b16 %v585
    %v754 = vunpack.c.h.b16 %v585
    %v755 = vunpack.c.l.b16 %v586
    %v756 = vunpack.c.h.b16 %v586
    %v757 = vunpack.c.l.b16 %v587
    %v758 = vunpack.c.h.b16 %v587
    %v759 = vunpack.c.l.b16 %v588
    %v760 = vunpack.c.h.b16 %v588
    %v761 = vunpack.c.l.b16 %v589
    %v762 = vunpack.c.h.b16 %v589
    %v763 = vunpack.c.l.b16 %v590
    %v764 = vunpack.c.h.b16 %v590
    %v765 = vunpack.c.l.b16 %v591
    %v766 = vunpack.c.h.b16 %v591
    %v767 = vunpack.c.l.b16 %v592
    %v768 = vunpack.c.h.b16 %v592
    %v769 = vunpack.c.l.b16 %v593
    %v770 = vunpack.c.h.b16 %v593
    %v771 = vunpack.c.l.b16 %v594
    %v772 = vunpack.c.h.b16 %v594
    %v773 = vunpack.c.l.b16 %v595
    %v774 = vunpack.c.h.b16 %v595
    %v775 = vunpack.c.l.b16 %v596
    %v776 = vunpack.c.h.b16 %v596
    %v777 = vunpack.c.l.b16 %v597
    %v778 = vunpack.c.h.b16 %v597
    %v779 = vunpack.c.l.b16 %v598
    %v780 = vunpack.c.h.b16 %v598
    %v781 = vunpack.c.l.b16 %v599
    %v782 = vunpack.c.h.b16 %v599
    %v783 = vunpack.c.l.b16 %v600
    %v784 = vunpack.c.h.b16 %v600
    %v785 = vunpack.c.l.b16 %v601
    %v786 = vunpack.c.h.b16 %v601
    %v787 = vunpack.c.l.b16 %v602
    %v788 = vunpack.c.h.b16 %v602
    %v789 = vunpack.c.l.b16 %v603
    %v790 = vunpack.c.h.b16 %v603
    %v791 = vunpack.c.l.b16 %v604
    %v792 = vunpack.c.h.b16 %v604
    %v793 = vunpack.c.l.b16 %v605
    %v794 = vunpack.c.h.b16 %v605
    %v795 = vunpack.c.l.b16 %v606
    %v796 = vunpack.c.h.b16 %v606
    %v797 = vunpack.c.l.b16 %v607
    %v798 = vunpack.c.h.b16 %v607
    %v799 = vunpack.c.l.b16 %v608
    %v800 = vunpack.c.h.b16 %v608
    %v801 = vpack.c.b16 %v675, %v673
    %v802 = vpack.c.b16 %v676, %v674
    %v803 = vpack.c.b16 %v679, %v677
    %v804 = vpack.c.b16 %v680, %v678
    %v805 = vpack.c.b16 %v683, %v681
    %v806 = vpack.c.b16 %v684, %v682
    %v807 = vpack.c.b16 %v687, %v685
    %v808 = vpack.c.b16 %v688, %v686
    %v809 = vpack.c.b16 %v691, %v689
    %v810 = vpack.c.b16 %v692, %v690
    %v811 = vpack.c.b16 %v695, %v693
    %v812 = vpack.c.b16 %v696, %v694
    %v813 = vpack.c.b16 %v699, %v697
    %v814 = vpack.c.b16 %v700, %v698
    %v815 = vpack.c.b16 %v703, %v701
    %v816 = vpack.c.b16 %v704, %v702
    %v817 = vpack.c.b16 %v707, %v705
    %v818 = vpack.c.b16 %v708, %v706
    %v819 = vpack.c.b16 %v711, %v709
    %v820 = vpack.c.b16 %v712, %v710
    %v821 = vpack.c.b16 %v715, %v713
    %v822 = vpack.c.b16 %v716, %v714
    %v823 = vpack.c.b16 %v719, %v717
    %v824 = vpack.c.b16 %v720, %v718
    %v825 = vpack.c.b16 %v723, %v721
    %v826 = vpack.c.b16 %v724, %v722
    %v827 = vpack.c.b16 %v727, %v725
    %v828 = vpack.c.b16 %v728, %v726
    %v829 = vpack.c.b16 %v731, %v729
    %v830 = vpack.c.b16 %v732, %v730
    %v831 = vpack.c.b16 %v735, %v733
    %v832 = vpack.c.b16 %v736, %v734
    %v833 = vpack.c.b16 %v739, %v737
    %v834 = vpack.c.b16 %v740, %v738
    %v835 = vpack.c.b16 %v743, %v741
    %v836 = vpack.c.b16 %v744, %v742
    %v837 = vpack.c.b16 %v747, %v745
    %v838 = vpack.c.b16 %v748, %v746
    %v839 = vpack.c.b16 %v751, %v749
    %v840 = vpack.c.b16 %v752, %v750
    %v841 = vpack.c.b16 %v755, %v753
    %v842 = vpack.c.b16 %v756, %v754
    %v843 = vpack.c.b16 %v759, %v757
    %v844 = vpack.c.b16 %v760, %v758
    %v845 = vpack.c.b16 %v763, %v761
    %v846 = vpack.c.b16 %v764, %v762
    %v847 = vpack.c.b16 %v767, %v765
    %v848 = vpack.c.b16 %v768, %v766
    %v849 = vpack.c.b16 %v771, %v769
    %v850 = vpack.c.b16 %v772, %v770
    %v851 = vpack.c.b16 %v775, %v773
    %v852 = vpack.c.b16 %v776, %v774
    %v853 = vpack.c.b16 %v779, %v777
    %v854 = vpack.c.b16 %v780, %v778
    %v855 = vpack.c.b16 %v783, %v781
    %v856 = vpack.c.b16 %v784, %v782
    %v857 = vpack.c.b16 %v787, %v785
    %v858 = vpack.c.b16 %v788, %v786
    %v859 = vpack.c.b16 %v791, %v789
    %v860 = vpack.c.b16 %v792, %v790
    %v861 = vpack.c.b16 %v795, %v793
    %v862 = vpack.c.b16 %v796, %v794
    %v863 = vpack.c.b16 %v799, %v797
    %v864 = vpack.c.b16 %v800, %v798
    %929 = vmatprep.subr.bf16.mxu0 %v802
    %930 = vmatpush1.bf16.msra.mxu0 %v801
    %931 = vmatprep.subr.bf16.mxu0 %v804
    %932 = vmatpush1.bf16.msra.mxu0 %v803
    %933 = vmatprep.subr.bf16.mxu0 %v806
    %934 = vmatpush1.bf16.msra.mxu0 %v805
    %935 = vmatprep.subr.bf16.mxu0 %v808
    %936 = vmatpush1.bf16.msra.mxu0 %v807
    %937 = vmatprep.subr.bf16.mxu0 %v810
    %938 = vmatpush1.bf16.msra.mxu0 %v809
    %939 = vmatprep.subr.bf16.mxu0 %v812
    %940 = vmatpush1.bf16.msra.mxu0 %v811
    %941 = vmatprep.subr.bf16.mxu0 %v814
    %942 = vmatpush1.bf16.msra.mxu0 %v813
    %943 = vmatprep.subr.bf16.mxu0 %v816
    %944 = vmatpush1.bf16.msra.mxu0 %v815
    %945 = vmatprep.subr.bf16.mxu0 %v818
    %946 = vmatpush1.bf16.msra.mxu0 %v817
    %947 = vmatprep.subr.bf16.mxu0 %v820
    %948 = vmatpush1.bf16.msra.mxu0 %v819
    %949 = vmatprep.subr.bf16.mxu0 %v822
    %950 = vmatpush1.bf16.msra.mxu0 %v821
    %951 = vmatprep.subr.bf16.mxu0 %v824
    %952 = vmatpush1.bf16.msra.mxu0 %v823
    %953 = vmatprep.subr.bf16.mxu0 %v826
    %954 = vmatpush1.bf16.msra.mxu0 %v825
    %955 = vmatprep.subr.bf16.mxu0 %v828
    %956 = vmatpush1.bf16.msra.mxu0 %v827
    %957 = vmatprep.subr.bf16.mxu0 %v830
    %958 = vmatpush1.bf16.msra.mxu0 %v829
    %959 = vmatprep.subr.bf16.mxu0 %v832
    %960 = vmatpush1.bf16.msra.mxu0 %v831
    %961 = vmatprep.mubr.bf16.mxu0 %v542
    %962 = vmatmul.mubr.bf16.gmra.mrb[0].mxu0 %v541
    %v963 = vpop.f32.mrb[0].mxu0
    %v964 = vadd.f32 0.0, %v963
    %v965 = vpop.f32.mrb[0].mxu0
    %v966 = vadd.f32 0.0, %v965
    %v967 = vpop.f32.mrb[0].mxu0
    %v968 = vpop.f32.mrb[0].mxu0
    %969 = vdwg.mxu0
    %970 = vmatprep.subr.bf16.mxu0 %v834
    %971 = vmatpush1.bf16.msra.mxu0 %v833
    %972 = vmatprep.subr.bf16.mxu0 %v836
    %973 = vmatpush1.bf16.msra.mxu0 %v835
    %974 = vmatprep.subr.bf16.mxu0 %v838
    %975 = vmatpush1.bf16.msra.mxu0 %v837
    %976 = vmatprep.subr.bf16.mxu0 %v840
    %977 = vmatpush1.bf16.msra.mxu0 %v839
    %978 = vmatprep.subr.bf16.mxu0 %v842
    %979 = vmatpush1.bf16.msra.mxu0 %v841
    %980 = vmatprep.subr.bf16.mxu0 %v844
    %981 = vmatpush1.bf16.msra.mxu0 %v843
    %982 = vmatprep.subr.bf16.mxu0 %v846
    %983 = vmatpush1.bf16.msra.mxu0 %v845
    %984 = vmatprep.subr.bf16.mxu0 %v848
    %985 = vmatpush1.bf16.msra.mxu0 %v847
    %986 = vmatprep.subr.bf16.mxu0 %v850
    %987 = vmatpush1.bf16.msra.mxu0 %v849
    %988 = vmatprep.subr.bf16.mxu0 %v852
    %989 = vmatpush1.bf16.msra.mxu0 %v851
    %990 = vmatprep.subr.bf16.mxu0 %v854
    %991 = vmatpush1.bf16.msra.mxu0 %v853
    %992 = vmatprep.subr.bf16.mxu0 %v856
    %993 = vmatpush1.bf16.msra.mxu0 %v855
    %994 = vmatprep.subr.bf16.mxu0 %v858
    %995 = vmatpush1.bf16.msra.mxu0 %v857
    %996 = vmatprep.subr.bf16.mxu0 %v860
    %997 = vmatpush1.bf16.msra.mxu0 %v859
    %998 = vmatprep.subr.bf16.mxu0 %v862
    %999 = vmatpush1.bf16.msra.mxu0 %v861
    %1000 = vmatprep.subr.bf16.mxu0 %v864
    %1001 = vmatpush1.bf16.msra.mxu0 %v863
    %1002 = vmatprep.mubr.bf16.mxu0 %v544
    %1003 = vmatmul.mubr.bf16.gmra.mrb[0].mxu0 %v543
    %v1004 = vpop.f32.mrb[0].mxu0
    %v1005 = vadd.f32 %v964, %v1004
    %v1006 = vpop.f32.mrb[0].mxu0
    %v1007 = vadd.f32 %v966, %v1006
    %v1008 = vpop.f32.mrb[0].mxu0
    %v1009 = vpop.f32.mrb[0].mxu0
    %1010 = vdwg.mxu0
    %v1011 = vxor.u32 %v1005, 2147483648
    %v1012 = vxor.u32 %v1007, 2147483648
    %v1013 = vmul.f32 %v1011, 1.442695
    %v1014 = vpow.pop %v1013
    %v1015 = vmul.f32 %v1012, 1.442695
    %v1016 = vpow.pop %v1015
    %v1017 = vadd.f32 %v1014, 1.0
    %v1018 = vadd.f32 %v1016, 1.0
    %v1019 = vrcp.pop %v1017
    %v1020 = vmul.f32 1.0, %v1019
    %v1021 = vrcp.pop %v1018
    %v1022 = vmul.f32 1.0, %v1021
    %v1025 = vcombine.low %v1020, %v1022
    %v1027 = vunpack.c.l.s4 1966171168
    %v1028 = vunpack.c.0.s8 %v1027
    %v1029 = vlaneseq
    %v1030 = vshrl.u32 %v1029, 7
    %v1031 = vsub.s32 %v1028, %v1030
    %v1032 = vrot.slane %v1025, %v1031
    %v1033 = vcombine.high %v1032, %v1032
    %v1035 = vunpack.c.l.s4 1966171168
    %v1036 = vunpack.c.0.s8 %v1035
    %v1037 = vlaneseq
    %v1038 = vshrl.u32 %v1037, 7
    %v1039 = vsub.s32 %v1036, %v1038
    %v1040 = vrot.slane %v1032, %v1039
    %v1042 = vunpack.c.l.s4 1966171168
    %v1043 = vunpack.c.0.s8 %v1042
    %v1044 = vlaneseq
    %v1045 = vshrl.u32 %v1044, 7
    %v1046 = vsub.s32 %v1043, %v1045
    %v1047 = vrot.slane %v1033, %v1046
    %v1048 = vlaneseq
    %v1049 = vshrl.u32 %v1048, 7
    %v1050 = vsub.s32 0, %v1049
    %v1051 = vrot.slane %v1040, %v1050
    %v1052 = vlaneseq
    %v1053 = vshrl.u32 %v1052, 7
    %v1054 = vsub.s32 1, %v1053
    %v1055 = vrot.slane %v1040, %v1054
    %v1056 = vlaneseq
    %v1057 = vshrl.u32 %v1056, 7
    %v1058 = vsub.s32 0, %v1057
    %v1059 = vrot.slane %v1047, %v1058
    %v1060 = vlaneseq
    %v1061 = vshrl.u32 %v1060, 7
    %v1062 = vsub.s32 1, %v1061
    %v1063 = vrot.slane %v1047, %v1062
    %v1068 = vmul.f32 %v432, %v1051
    %v1069 = vmul.f32 %v433, %v1055
    %v1070 = vmul.f32 %v434, %v1051
    %v1071 = vmul.f32 %v435, %v1055
    %v1072 = vmul.f32 %v436, %v1051
    %v1073 = vmul.f32 %v437, %v1055
    %v1074 = vmul.f32 %v438, %v1051
    %v1075 = vmul.f32 %v439, %v1055
    %v1076 = vmul.f32 %v440, %v1059
    %v1077 = vmul.f32 %v441, %v1063
    %v1078 = vmul.f32 %v442, %v1059
    %v1079 = vmul.f32 %v443, %v1063
    %v1080 = vmul.f32 %v444, %v1059
    %v1081 = vmul.f32 %v445, %v1063
    %v1082 = vmul.f32 %v446, %v1059
    %v1083 = vmul.f32 %v447, %v1063
    %1084 = vst [vmem:[#allocation7] sm:$0xff] %v1068
    %1085 = vst [vmem:[#allocation7 + $0x8] sm:$0xff] %v1069
    %1086 = vst [vmem:[#allocation7 + $0x10] sm:$0xff] %v1070
    %1087 = vst [vmem:[#allocation7 + $0x18] sm:$0xff] %v1071
    %1088 = vst [vmem:[#allocation7 + $0x20] sm:$0xff] %v1072
    %1089 = vst [vmem:[#allocation7 + $0x28] sm:$0xff] %v1073
    %1090 = vst [vmem:[#allocation7 + $0x30] sm:$0xff] %v1074
    %1091 = vst [vmem:[#allocation7 + $0x38] sm:$0xff] %v1075
    %1092 = vst [vmem:[#allocation7 + $0x40] sm:$0xff] %v1076
    %1093 = vst [vmem:[#allocation7 + $0x48] sm:$0xff] %v1077
    %1094 = vst [vmem:[#allocation7 + $0x50] sm:$0xff] %v1078
    %1095 = vst [vmem:[#allocation7 + $0x58] sm:$0xff] %v1079
    %1096 = vst [vmem:[#allocation7 + $0x60] sm:$0xff] %v1080
    %1097 = vst [vmem:[#allocation7 + $0x68] sm:$0xff] %v1081
    %1098 = vst [vmem:[#allocation7 + $0x70] sm:$0xff] %v1082
    %1099 = vst [vmem:[#allocation7 + $0x78] sm:$0xff] %v1083
    // Predicated region
    $region26: #{tpu_custom_call.1} parent=1 // pred_check
      _
    $region27: #{tpu_custom_call.1} parent=1 // pred_check_branch
      %1101 = sbr.rel (0) target = $region29
    $region28: #{tpu_custom_call.1} parent=1 // pred_region
      %s1103 = ssub.s32 2048, 2048
      %1104 = vsyncadd [#allocation4], %s1103
      %s1105 = sshll.u32 [#allocation7], 4
      %s1106 = int_to_ptr.vmem [resolvable:$true] %s1105
      %1111 = dma.vmem_to_hbm [thread:$0]  %s1106, 2048, %s4, [#allocation4], 256, 256, 16
    $region29: #{tpu_custom_call.1} parent=1 // pred_fallthru
      _
    // Predicated region
    $region30: #{tpu_custom_call.1} parent=1 // pred_check
      _
    $region31: #{tpu_custom_call.1} parent=1 // pred_check_branch
      %1113 = sbr.rel (0) target = $region33
    $region32: #{tpu_custom_call.1} parent=1 // pred_region
      %1114 = dma.done [#allocation4], 2048
    $region33: #{tpu_custom_call.1} parent=1 // pred_fallthru
      _
    %1115 = vsyncpa [#allocation3], 1
    %1116 = vsyncpa [#allocation6], 1
    %1117 = vsyncpa [#allocation4], 1

</llo_original>
